<compile_context>
chip_gen: v6e
topology: v6e:2x2x1
jax: 0.10.0
libtpu: 0.0.40
codegen_flags: <defaults>
</compile_context>

<pallas_src>
import functools

import jax
import jax.numpy as jnp
from jax.experimental import pallas as pl
from jax.experimental.pallas import tpu as pltpu


def mha_ln_kernel(x_ref, wqkv_ref, bqkv_ref, wo_ref, bo_ref, gamma_ref, beta_ref,
                  out_ref, *, num_heads, seq_len, eps):
    # x_ref block: (Mt, E) flattened tokens (batch-major, seq-minor), f32.
    x = x_ref[...].astype(jnp.float32)
    Mt, E = x.shape
    H = num_heads
    L = seq_len
    B = Mt // L                      # number of batch elements in this tile
    dh = E // H
    scale = 1.0 / (dh ** 0.5)

    # ---- Fused QKV projection: single bf16 matmul, f32 accumulation. ----
    qkv = jnp.dot(x.astype(jnp.bfloat16), wqkv_ref[...],
                  preferred_element_type=jnp.float32) + bqkv_ref[0]     # (Mt, 3E)

    # Lane-aligned (multiples of E=256) splits of the fused projection.
    q = qkv[:, 0 * E:1 * E] * scale
    k = qkv[:, 1 * E:2 * E]
    v = qkv[:, 2 * E:3 * E]

    # ---- Stack heads into one leading batch axis: (H*B, L, dh). ----
    # Per-head lane slice + layout-preserving leading-dim reshape + leading concat
    # (avoids unsupported general last-dim-splitting reshapes/4D transposes).
    def to_heads(t):
        return jnp.concatenate(
            [t[:, h * dh:(h + 1) * dh].reshape(B, L, dh) for h in range(H)],
            axis=0)

    qh = to_heads(q).astype(jnp.bfloat16)       # (H*B, L, dh)
    kh = to_heads(k).astype(jnp.bfloat16)
    vh = to_heads(v).astype(jnp.bfloat16)

    # ---- Batched scaled-dot-product attention (single MXU stream). ----
    s = jnp.einsum("bld,bmd->blm", qh, kh,
                   preferred_element_type=jnp.float32)                  # (H*B, L, L)
    s = s - jnp.max(s, axis=-1, keepdims=True)
    p = jnp.exp(s)
    p = p * pl.reciprocal(jnp.sum(p, axis=-1, keepdims=True), approx=True)

    o = jnp.einsum("blm,bmd->bld", p.astype(jnp.bfloat16), vh,
                   preferred_element_type=jnp.float32)                  # (H*B, L, dh)

    # ---- Re-assemble heads back into (Mt, E) (head order along lanes). ----
    o2 = jnp.concatenate(
        [o[h * B:(h + 1) * B].reshape(Mt, dh) for h in range(H)], axis=-1)

    # ---- Output projection (pre-transposed bf16 weight). ----
    attn = jnp.dot(o2.astype(jnp.bfloat16), wo_ref[...],
                   preferred_element_type=jnp.float32) + bo_ref[0]

    # ---- Residual + LayerNorm over features (f32). ----
    y = x + attn
    mu = jnp.mean(y, axis=-1, keepdims=True)
    yc = y - mu
    var = jnp.mean(yc * yc, axis=-1, keepdims=True)
    out = yc * jax.lax.rsqrt(var + eps) * gamma_ref[0] + beta_ref[0]

    out_ref[...] = out.astype(out_ref.dtype)


def mha_module_forward(x, params, *, num_heads, eps=1e-5):
    """x: (L, N, E) float32, same convention as the PyTorch module."""
    L, N, E = x.shape

    # Flatten to a token-major (N*L, E) slab once (single cheap XLA op at this size).
    xf = jnp.transpose(x, (1, 0, 2)).reshape(N * L, E)

    # Fused + pre-transposed + bf16 weights (one-time wrapper-side XLA ops).
    wqkv = jnp.concatenate(
        [params["wq"].T, params["wk"].T, params["wv"].T], axis=1).astype(jnp.bfloat16)
    bqkv = jnp.concatenate(
        [params["bq"], params["bk"], params["bv"]]).reshape(1, 3 * E).astype(jnp.float32)
    wo_t = params["wo"].T.astype(jnp.bfloat16)
    bo = params["bo"].reshape(1, E).astype(jnp.float32)
    gamma = params["gamma"].reshape(1, E).astype(jnp.float32)
    beta = params["beta"].reshape(1, E).astype(jnp.float32)

    # Whole problem fits easily in VMEM at these shapes -> one grid step.
    # (Each grid step must cover whole batch elements so attention stays in-tile;
    #  at production L, stream K/V in tiles with online softmax instead.)
    Mt = N * L
    grid = ((N * L) // Mt,)

    kernel = functools.partial(mha_ln_kernel, num_heads=num_heads,
                               seq_len=L, eps=eps)

    def whole(shape):
        return pl.BlockSpec(shape, lambda i: (0,) * len(shape))

    out = pl.pallas_call(
        kernel,
        out_shape=jax.ShapeDtypeStruct((N * L, E), x.dtype),
        grid=grid,
        in_specs=[
            pl.BlockSpec((Mt, E), lambda i: (i, 0)),   # flattened tokens
            whole((E, 3 * E)),                         # fused QKV weight (bf16)
            whole((1, 3 * E)),                         # fused QKV bias
            whole((E, E)),                             # out-proj weight (bf16, pre-T)
            whole((1, E)),                             # out-proj bias
            whole((1, E)),                             # LN gamma
            whole((1, E)),                             # LN beta
        ],
        out_specs=pl.BlockSpec((Mt, E), lambda i: (i, 0)),
        compiler_params=pltpu.CompilerParams(
            dimension_semantics=("parallel",)),
    )(xf, wqkv, bqkv, wo_t, bo, gamma, beta)

    return out.reshape(N, L, E).transpose(1, 0, 2)     # back to (L, N, E)


def reference_forward(x, params, *, num_heads, eps=1e-5):
    """Plain-JAX reference mirroring nn.MultiheadAttention + residual + LayerNorm."""
    L, N, E = x.shape
    dh = E // num_heads
    q = jnp.einsum("lne,fe->lnf", x, params["wq"]) + params["bq"]
    k = jnp.einsum("lne,fe->lnf", x, params["wk"]) + params["bk"]
    v = jnp.einsum("lne,fe->lnf", x, params["wv"]) + params["bv"]
    q = q.reshape(L, N, num_heads, dh)
    k = k.reshape(L, N, num_heads, dh)
    v = v.reshape(L, N, num_heads, dh)
    s = jnp.einsum("lnhd,mnhd->nhlm", q, k) / (dh ** 0.5)
    p = jax.nn.softmax(s, axis=-1)
    o = jnp.einsum("nhlm,mnhd->lnhd", p, v).reshape(L, N, E)
    attn_out = jnp.einsum("lne,fe->lnf", o, params["wo"]) + params["bo"]
    y = x + attn_out
    mu = jnp.mean(y, axis=-1, keepdims=True)
    var = jnp.mean((y - mu) ** 2, axis=-1, keepdims=True)
    return (y - mu) / jnp.sqrt(var + eps) * params["gamma"] + params["beta"]


if __name__ == "__main__":
    # Shapes consistent with the module spec: d_model=256, num_heads=8,
    # input layout (seq L, batch N, d_model).
    L, N, d_model, num_heads = 8, 2, 256, 8

    key = jax.random.PRNGKey(0)
    keys = jax.random.split(key, 8)
    scale = 0.05
    params = {
        "wq": scale * jax.random.normal(keys[0], (d_model, d_model), jnp.float32),
        "wk": scale * jax.random.normal(keys[1], (d_model, d_model), jnp.float32),
        "wv": scale * jax.random.normal(keys[2], (d_model, d_model), jnp.float32),
        "bq": scale * jax.random.normal(keys[3], (d_model,), jnp.float32),
        "bk": scale * jax.random.normal(keys[4], (d_model,), jnp.float32),
        "bv": scale * jax.random.normal(keys[5], (d_model,), jnp.float32),
        "wo": scale * jax.random.normal(keys[6], (d_model, d_model), jnp.float32),
        "bo": jnp.zeros((d_model,), jnp.float32),
        "gamma": jnp.ones((d_model,), jnp.float32),
        "beta": jnp.zeros((d_model,), jnp.float32),
    }
    x = jax.random.normal(jax.random.PRNGKey(1), (L, N, d_model), jnp.float32)

    out = mha_module_forward(x, params, num_heads=num_heads)
    out = jax.block_until_ready(out)

    ref = reference_forward(x, params, num_heads=num_heads)
    assert out.shape == (L, N, d_model)
    # bf16 weights/activations on the MXU path -> slightly looser tolerance.
    assert bool(jnp.allclose(out, ref, rtol=2e-2, atol=2e-2)), (
        "mismatch vs reference, max abs diff "
        f"{float(jnp.max(jnp.abs(out - ref)))}")

    print("KERNEL_OK")
</pallas_src>

<mosaic_0001>
module attributes {stable_mosaic.version = 11 : i64} {
  func.func @mha_ln_kernel(%arg0: i32, %arg1: memref<16x256xf32, #tpu.memory_space<vmem>>, %arg2: memref<256x768xbf16, #tpu.memory_space<vmem>>, %arg3: memref<1x768xf32, #tpu.memory_space<vmem>>, %arg4: memref<256x256xbf16, #tpu.memory_space<vmem>>, %arg5: memref<1x256xf32, #tpu.memory_space<vmem>>, %arg6: memref<1x256xf32, #tpu.memory_space<vmem>>, %arg7: memref<1x256xf32, #tpu.memory_space<vmem>>, %arg8: memref<16x256xf32, #tpu.memory_space<vmem>>) attributes {dimension_semantics = [#tpu.dimension_semantics<parallel>], iteration_bounds = array<i64: 1>, scalar_prefetch = 0 : i64, scratch_operands = 0 : i64, tpu.core_type = #tpu.core_type<tc>, window_params = [{transform_indices = @transform_0, window_bounds = array<i64: 16, 256>}, {pipeline_mode = #tpu.pipeline_mode<synchronous>, transform_indices = @transform_1, window_bounds = array<i64: 256, 768>}, {pipeline_mode = #tpu.pipeline_mode<synchronous>, transform_indices = @transform_2, window_bounds = array<i64: 1, 768>}, {pipeline_mode = #tpu.pipeline_mode<synchronous>, transform_indices = @transform_3, window_bounds = array<i64: 256, 256>}, {pipeline_mode = #tpu.pipeline_mode<synchronous>, transform_indices = @transform_4, window_bounds = array<i64: 1, 256>}, {pipeline_mode = #tpu.pipeline_mode<synchronous>, transform_indices = @transform_5, window_bounds = array<i64: 1, 256>}, {pipeline_mode = #tpu.pipeline_mode<synchronous>, transform_indices = @transform_6, window_bounds = array<i64: 1, 256>}, {transform_indices = @transform_7, window_bounds = array<i64: 16, 256>}]} {
    %c0 = arith.constant 0 : index
    %c0_0 = arith.constant 0 : index
    %0 = vector.load %arg1[%c0, %c0_0] : memref<16x256xf32, #tpu.memory_space<vmem>>, vector<16x256xf32>
    %1 = arith.truncf %0 : vector<16x256xf32> to vector<16x256xbf16>
    %c0_1 = arith.constant 0 : index
    %c0_2 = arith.constant 0 : index
    %2 = vector.load %arg2[%c0_1, %c0_2] : memref<256x768xbf16, #tpu.memory_space<vmem>>, vector<256x768xbf16>
    %cst = arith.constant dense<0.000000e+00> : vector<16x768xf32>
    %3 = tpu.matmul %1, %2, %cst {dimension_numbers = #tpu.dot_dimension_numbers<[1], [0], [0], [1], [0, 0, 1, 1], [], []>} : vector<16x256xbf16>, vector<256x768xbf16>, vector<16x768xf32> -> vector<16x768xf32>
    %c0_3 = arith.constant 0 : index
    %c0_4 = arith.constant 0 : index
    %4 = vector.load %arg3[%c0_3, %c0_4] : memref<1x768xf32, #tpu.memory_space<vmem>>, vector<1x768xf32>
    %5 = vector.shape_cast %4 : vector<1x768xf32> to vector<768xf32>
    %6 = vector.shape_cast %5 : vector<768xf32> to vector<1x768xf32>
    %7 = vector.broadcast %6 : vector<1x768xf32> to vector<16x768xf32>
    %8 = arith.addf %3, %7 : vector<16x768xf32>
    %9 = vector.extract_strided_slice %8 {offsets = [0, 0], sizes = [16, 256], strides = [1, 1]} : vector<16x768xf32> to vector<16x256xf32>
    %cst_5 = arith.constant 0.176776692 : f32
    %10 = vector.broadcast %cst_5 : f32 to vector<16x256xf32>
    %11 = arith.mulf %9, %10 : vector<16x256xf32>
    %12 = vector.extract_strided_slice %8 {offsets = [0, 256], sizes = [16, 256], strides = [1, 1]} : vector<16x768xf32> to vector<16x256xf32>
    %13 = vector.extract_strided_slice %8 {offsets = [0, 512], sizes = [16, 256], strides = [1, 1]} : vector<16x768xf32> to vector<16x256xf32>
    %14 = vector.extract_strided_slice %11 {offsets = [0, 0], sizes = [16, 32], strides = [1, 1]} : vector<16x256xf32> to vector<16x32xf32>
    %15 = vector.shape_cast %14 : vector<16x32xf32> to vector<2x8x32xf32>
    %16 = vector.extract_strided_slice %11 {offsets = [0, 32], sizes = [16, 32], strides = [1, 1]} : vector<16x256xf32> to vector<16x32xf32>
    %17 = vector.shape_cast %16 : vector<16x32xf32> to vector<2x8x32xf32>
    %18 = vector.extract_strided_slice %11 {offsets = [0, 64], sizes = [16, 32], strides = [1, 1]} : vector<16x256xf32> to vector<16x32xf32>
    %19 = vector.shape_cast %18 : vector<16x32xf32> to vector<2x8x32xf32>
    %20 = vector.extract_strided_slice %11 {offsets = [0, 96], sizes = [16, 32], strides = [1, 1]} : vector<16x256xf32> to vector<16x32xf32>
    %21 = vector.shape_cast %20 : vector<16x32xf32> to vector<2x8x32xf32>
    %22 = vector.extract_strided_slice %11 {offsets = [0, 128], sizes = [16, 32], strides = [1, 1]} : vector<16x256xf32> to vector<16x32xf32>
    %23 = vector.shape_cast %22 : vector<16x32xf32> to vector<2x8x32xf32>
    %24 = vector.extract_strided_slice %11 {offsets = [0, 160], sizes = [16, 32], strides = [1, 1]} : vector<16x256xf32> to vector<16x32xf32>
    %25 = vector.shape_cast %24 : vector<16x32xf32> to vector<2x8x32xf32>
    %26 = vector.extract_strided_slice %11 {offsets = [0, 192], sizes = [16, 32], strides = [1, 1]} : vector<16x256xf32> to vector<16x32xf32>
    %27 = vector.shape_cast %26 : vector<16x32xf32> to vector<2x8x32xf32>
    %28 = vector.extract_strided_slice %11 {offsets = [0, 224], sizes = [16, 32], strides = [1, 1]} : vector<16x256xf32> to vector<16x32xf32>
    %29 = vector.shape_cast %28 : vector<16x32xf32> to vector<2x8x32xf32>
    %30 = tpu.concatenate %15, %17, %19, %21, %23, %25, %27, %29 in 0 : vector<2x8x32xf32>, vector<2x8x32xf32>, vector<2x8x32xf32>, vector<2x8x32xf32>, vector<2x8x32xf32>, vector<2x8x32xf32>, vector<2x8x32xf32>, vector<2x8x32xf32> -> vector<16x8x32xf32>
    %31 = arith.truncf %30 : vector<16x8x32xf32> to vector<16x8x32xbf16>
    %32 = vector.extract_strided_slice %12 {offsets = [0, 0], sizes = [16, 32], strides = [1, 1]} : vector<16x256xf32> to vector<16x32xf32>
    %33 = vector.shape_cast %32 : vector<16x32xf32> to vector<2x8x32xf32>
    %34 = vector.extract_strided_slice %12 {offsets = [0, 32], sizes = [16, 32], strides = [1, 1]} : vector<16x256xf32> to vector<16x32xf32>
    %35 = vector.shape_cast %34 : vector<16x32xf32> to vector<2x8x32xf32>
    %36 = vector.extract_strided_slice %12 {offsets = [0, 64], sizes = [16, 32], strides = [1, 1]} : vector<16x256xf32> to vector<16x32xf32>
    %37 = vector.shape_cast %36 : vector<16x32xf32> to vector<2x8x32xf32>
    %38 = vector.extract_strided_slice %12 {offsets = [0, 96], sizes = [16, 32], strides = [1, 1]} : vector<16x256xf32> to vector<16x32xf32>
    %39 = vector.shape_cast %38 : vector<16x32xf32> to vector<2x8x32xf32>
    %40 = vector.extract_strided_slice %12 {offsets = [0, 128], sizes = [16, 32], strides = [1, 1]} : vector<16x256xf32> to vector<16x32xf32>
    %41 = vector.shape_cast %40 : vector<16x32xf32> to vector<2x8x32xf32>
    %42 = vector.extract_strided_slice %12 {offsets = [0, 160], sizes = [16, 32], strides = [1, 1]} : vector<16x256xf32> to vector<16x32xf32>
    %43 = vector.shape_cast %42 : vector<16x32xf32> to vector<2x8x32xf32>
    %44 = vector.extract_strided_slice %12 {offsets = [0, 192], sizes = [16, 32], strides = [1, 1]} : vector<16x256xf32> to vector<16x32xf32>
    %45 = vector.shape_cast %44 : vector<16x32xf32> to vector<2x8x32xf32>
    %46 = vector.extract_strided_slice %12 {offsets = [0, 224], sizes = [16, 32], strides = [1, 1]} : vector<16x256xf32> to vector<16x32xf32>
    %47 = vector.shape_cast %46 : vector<16x32xf32> to vector<2x8x32xf32>
    %48 = tpu.concatenate %33, %35, %37, %39, %41, %43, %45, %47 in 0 : vector<2x8x32xf32>, vector<2x8x32xf32>, vector<2x8x32xf32>, vector<2x8x32xf32>, vector<2x8x32xf32>, vector<2x8x32xf32>, vector<2x8x32xf32>, vector<2x8x32xf32> -> vector<16x8x32xf32>
    %49 = arith.truncf %48 : vector<16x8x32xf32> to vector<16x8x32xbf16>
    %50 = vector.extract_strided_slice %13 {offsets = [0, 0], sizes = [16, 32], strides = [1, 1]} : vector<16x256xf32> to vector<16x32xf32>
    %51 = vector.shape_cast %50 : vector<16x32xf32> to vector<2x8x32xf32>
    %52 = vector.extract_strided_slice %13 {offsets = [0, 32], sizes = [16, 32], strides = [1, 1]} : vector<16x256xf32> to vector<16x32xf32>
    %53 = vector.shape_cast %52 : vector<16x32xf32> to vector<2x8x32xf32>
    %54 = vector.extract_strided_slice %13 {offsets = [0, 64], sizes = [16, 32], strides = [1, 1]} : vector<16x256xf32> to vector<16x32xf32>
    %55 = vector.shape_cast %54 : vector<16x32xf32> to vector<2x8x32xf32>
    %56 = vector.extract_strided_slice %13 {offsets = [0, 96], sizes = [16, 32], strides = [1, 1]} : vector<16x256xf32> to vector<16x32xf32>
    %57 = vector.shape_cast %56 : vector<16x32xf32> to vector<2x8x32xf32>
    %58 = vector.extract_strided_slice %13 {offsets = [0, 128], sizes = [16, 32], strides = [1, 1]} : vector<16x256xf32> to vector<16x32xf32>
    %59 = vector.shape_cast %58 : vector<16x32xf32> to vector<2x8x32xf32>
    %60 = vector.extract_strided_slice %13 {offsets = [0, 160], sizes = [16, 32], strides = [1, 1]} : vector<16x256xf32> to vector<16x32xf32>
    %61 = vector.shape_cast %60 : vector<16x32xf32> to vector<2x8x32xf32>
    %62 = vector.extract_strided_slice %13 {offsets = [0, 192], sizes = [16, 32], strides = [1, 1]} : vector<16x256xf32> to vector<16x32xf32>
    %63 = vector.shape_cast %62 : vector<16x32xf32> to vector<2x8x32xf32>
    %64 = vector.extract_strided_slice %13 {offsets = [0, 224], sizes = [16, 32], strides = [1, 1]} : vector<16x256xf32> to vector<16x32xf32>
    %65 = vector.shape_cast %64 : vector<16x32xf32> to vector<2x8x32xf32>
    %66 = tpu.concatenate %51, %53, %55, %57, %59, %61, %63, %65 in 0 : vector<2x8x32xf32>, vector<2x8x32xf32>, vector<2x8x32xf32>, vector<2x8x32xf32>, vector<2x8x32xf32>, vector<2x8x32xf32>, vector<2x8x32xf32>, vector<2x8x32xf32> -> vector<16x8x32xf32>
    %67 = arith.truncf %66 : vector<16x8x32xf32> to vector<16x8x32xbf16>
    "tpu.trace_start"() <{level = 10 : i32, message = "bld,bmd->blm"}> : () -> ()
    %cst_6 = arith.constant dense<0.000000e+00> : vector<16x8x8xf32>
    %68 = tpu.matmul %31, %49, %cst_6 {dimension_numbers = #tpu.dot_dimension_numbers<[2], [2], [1], [1], [0, 0, 0, 1, 1, 1], [0], [0]>} : vector<16x8x32xbf16>, vector<16x8x32xbf16>, vector<16x8x8xf32> -> vector<16x8x8xf32>
    "tpu.trace_stop"() : () -> ()
    %cst_7 = arith.constant dense<0xFF800000> : vector<16x8xf32>
    %69 = vector.multi_reduction <maximumf>, %68, %cst_7 [2] : vector<16x8x8xf32> to vector<16x8xf32>
    %70 = vector.shape_cast %69 : vector<16x8xf32> to vector<16x8x1xf32>
    %71 = vector.broadcast %70 : vector<16x8x1xf32> to vector<16x8x8xf32>
    %72 = arith.subf %68, %71 : vector<16x8x8xf32>
    %73 = math.exp %72 : vector<16x8x8xf32>
    %cst_8 = arith.constant dense<0.000000e+00> : vector<16x8xf32>
    %74 = vector.multi_reduction <add>, %73, %cst_8 [2] : vector<16x8x8xf32> to vector<16x8xf32>
    %75 = vector.shape_cast %74 : vector<16x8xf32> to vector<16x8x1xf32>
    %76 = tpu.reciprocal %75 {approx = true} : vector<16x8x1xf32> -> vector<16x8x1xf32>
    %77 = vector.broadcast %76 : vector<16x8x1xf32> to vector<16x8x8xf32>
    %78 = arith.mulf %73, %77 : vector<16x8x8xf32>
    %79 = arith.truncf %78 : vector<16x8x8xf32> to vector<16x8x8xbf16>
    "tpu.trace_start"() <{level = 10 : i32, message = "blm,bmd->bld"}> : () -> ()
    %cst_9 = arith.constant dense<0.000000e+00> : vector<16x8x32xf32>
    %80 = tpu.matmul %79, %67, %cst_9 {dimension_numbers = #tpu.dot_dimension_numbers<[2], [1], [1], [2], [0, 0, 0, 1, 1, 2], [0], [0]>} : vector<16x8x8xbf16>, vector<16x8x32xbf16>, vector<16x8x32xf32> -> vector<16x8x32xf32>
    "tpu.trace_stop"() : () -> ()
    %81 = vector.extract_strided_slice %80 {offsets = [0, 0, 0], sizes = [2, 8, 32], strides = [1, 1, 1]} : vector<16x8x32xf32> to vector<2x8x32xf32>
    %82 = vector.shape_cast %81 : vector<2x8x32xf32> to vector<16x32xf32>
    %83 = vector.extract_strided_slice %80 {offsets = [2, 0, 0], sizes = [2, 8, 32], strides = [1, 1, 1]} : vector<16x8x32xf32> to vector<2x8x32xf32>
    %84 = vector.shape_cast %83 : vector<2x8x32xf32> to vector<16x32xf32>
    %85 = vector.extract_strided_slice %80 {offsets = [4, 0, 0], sizes = [2, 8, 32], strides = [1, 1, 1]} : vector<16x8x32xf32> to vector<2x8x32xf32>
    %86 = vector.shape_cast %85 : vector<2x8x32xf32> to vector<16x32xf32>
    %87 = vector.extract_strided_slice %80 {offsets = [6, 0, 0], sizes = [2, 8, 32], strides = [1, 1, 1]} : vector<16x8x32xf32> to vector<2x8x32xf32>
    %88 = vector.shape_cast %87 : vector<2x8x32xf32> to vector<16x32xf32>
    %89 = vector.extract_strided_slice %80 {offsets = [8, 0, 0], sizes = [2, 8, 32], strides = [1, 1, 1]} : vector<16x8x32xf32> to vector<2x8x32xf32>
    %90 = vector.shape_cast %89 : vector<2x8x32xf32> to vector<16x32xf32>
    %91 = vector.extract_strided_slice %80 {offsets = [10, 0, 0], sizes = [2, 8, 32], strides = [1, 1, 1]} : vector<16x8x32xf32> to vector<2x8x32xf32>
    %92 = vector.shape_cast %91 : vector<2x8x32xf32> to vector<16x32xf32>
    %93 = vector.extract_strided_slice %80 {offsets = [12, 0, 0], sizes = [2, 8, 32], strides = [1, 1, 1]} : vector<16x8x32xf32> to vector<2x8x32xf32>
    %94 = vector.shape_cast %93 : vector<2x8x32xf32> to vector<16x32xf32>
    %95 = vector.extract_strided_slice %80 {offsets = [14, 0, 0], sizes = [2, 8, 32], strides = [1, 1, 1]} : vector<16x8x32xf32> to vector<2x8x32xf32>
    %96 = vector.shape_cast %95 : vector<2x8x32xf32> to vector<16x32xf32>
    %97 = tpu.concatenate %82, %84, %86, %88, %90, %92, %94, %96 in 1 : vector<16x32xf32>, vector<16x32xf32>, vector<16x32xf32>, vector<16x32xf32>, vector<16x32xf32>, vector<16x32xf32>, vector<16x32xf32>, vector<16x32xf32> -> vector<16x256xf32>
    %98 = arith.truncf %97 : vector<16x256xf32> to vector<16x256xbf16>
    %c0_10 = arith.constant 0 : index
    %c0_11 = arith.constant 0 : index
    %99 = vector.load %arg4[%c0_10, %c0_11] : memref<256x256xbf16, #tpu.memory_space<vmem>>, vector<256x256xbf16>
    %cst_12 = arith.constant dense<0.000000e+00> : vector<16x256xf32>
    %100 = tpu.matmul %98, %99, %cst_12 {dimension_numbers = #tpu.dot_dimension_numbers<[1], [0], [0], [1], [0, 0, 1, 1], [], []>} : vector<16x256xbf16>, vector<256x256xbf16>, vector<16x256xf32> -> vector<16x256xf32>
    %c0_13 = arith.constant 0 : index
    %c0_14 = arith.constant 0 : index
    %101 = vector.load %arg5[%c0_13, %c0_14] : memref<1x256xf32, #tpu.memory_space<vmem>>, vector<1x256xf32>
    %102 = vector.shape_cast %101 : vector<1x256xf32> to vector<256xf32>
    %103 = vector.shape_cast %102 : vector<256xf32> to vector<1x256xf32>
    %104 = vector.broadcast %103 : vector<1x256xf32> to vector<16x256xf32>
    %105 = arith.addf %100, %104 : vector<16x256xf32>
    %106 = arith.addf %0, %105 : vector<16x256xf32>
    %cst_15 = arith.constant dense<0.000000e+00> : vector<16xf32>
    %107 = vector.multi_reduction <add>, %106, %cst_15 [1] : vector<16x256xf32> to vector<16xf32>
    %108 = vector.shape_cast %107 : vector<16xf32> to vector<16x1xf32>
    %cst_16 = arith.constant 2.560000e+02 : f32
    %109 = vector.broadcast %cst_16 : f32 to vector<16x1xf32>
    %110 = arith.divf %108, %109 : vector<16x1xf32>
    %111 = vector.broadcast %110 : vector<16x1xf32> to vector<16x256xf32>
    %112 = arith.subf %106, %111 : vector<16x256xf32>
    %113 = arith.mulf %112, %112 : vector<16x256xf32>
    %cst_17 = arith.constant dense<0.000000e+00> : vector<16xf32>
    %114 = vector.multi_reduction <add>, %113, %cst_17 [1] : vector<16x256xf32> to vector<16xf32>
    %115 = vector.shape_cast %114 : vector<16xf32> to vector<16x1xf32>
    %cst_18 = arith.constant 2.560000e+02 : f32
    %116 = vector.broadcast %cst_18 : f32 to vector<16x1xf32>
    %117 = arith.divf %115, %116 : vector<16x1xf32>
    %cst_19 = arith.constant 9.99999974E-6 : f32
    %118 = vector.broadcast %cst_19 : f32 to vector<16x1xf32>
    %119 = arith.addf %117, %118 : vector<16x1xf32>
    %120 = math.rsqrt %119 : vector<16x1xf32>
    %121 = vector.broadcast %120 : vector<16x1xf32> to vector<16x256xf32>
    %122 = arith.mulf %112, %121 : vector<16x256xf32>
    %c0_20 = arith.constant 0 : index
    %c0_21 = arith.constant 0 : index
    %123 = vector.load %arg6[%c0_20, %c0_21] : memref<1x256xf32, #tpu.memory_space<vmem>>, vector<1x256xf32>
    %124 = vector.shape_cast %123 : vector<1x256xf32> to vector<256xf32>
    %125 = vector.shape_cast %124 : vector<256xf32> to vector<1x256xf32>
    %126 = vector.broadcast %125 : vector<1x256xf32> to vector<16x256xf32>
    %127 = arith.mulf %122, %126 : vector<16x256xf32>
    %c0_22 = arith.constant 0 : index
    %c0_23 = arith.constant 0 : index
    %128 = vector.load %arg7[%c0_22, %c0_23] : memref<1x256xf32, #tpu.memory_space<vmem>>, vector<1x256xf32>
    %129 = vector.shape_cast %128 : vector<1x256xf32> to vector<256xf32>
    %130 = vector.shape_cast %129 : vector<256xf32> to vector<1x256xf32>
    %131 = vector.broadcast %130 : vector<1x256xf32> to vector<16x256xf32>
    %132 = arith.addf %127, %131 : vector<16x256xf32>
    %c0_24 = arith.constant 0 : index
    %c0_25 = arith.constant 0 : index
    %133 = vector.load %arg8[%c0_24, %c0_25] : memref<16x256xf32, #tpu.memory_space<vmem>>, vector<16x256xf32>
    tpu.vector_store %arg8[%c0_24, %c0_25], %132 {strides = array<i32>} : memref<16x256xf32, #tpu.memory_space<vmem>>, vector<16x256xf32>,
    return
  }
  func.func @transform_0(%arg0: i32) -> (i32, i32) {
    %c0_i32 = arith.constant 0 : i32
    %c0_i32_0 = arith.constant 0 : i32
    return %arg0, %c0_i32 : i32, i32
  }
  func.func @transform_1(%arg0: i32) -> (i32, i32) {
    %c0_i32 = arith.constant 0 : i32
    %c0_i32_0 = arith.constant 0 : i32
    %c0_i32_1 = arith.constant 0 : i32
    return %c0_i32, %c0_i32_0 : i32, i32
  }
  func.func @transform_2(%arg0: i32) -> (i32, i32) {
    %c0_i32 = arith.constant 0 : i32
    %c0_i32_0 = arith.constant 0 : i32
    %c0_i32_1 = arith.constant 0 : i32
    return %c0_i32, %c0_i32_0 : i32, i32
  }
  func.func @transform_3(%arg0: i32) -> (i32, i32) {
    %c0_i32 = arith.constant 0 : i32
    %c0_i32_0 = arith.constant 0 : i32
    %c0_i32_1 = arith.constant 0 : i32
    return %c0_i32, %c0_i32_0 : i32, i32
  }
  func.func @transform_4(%arg0: i32) -> (i32, i32) {
    %c0_i32 = arith.constant 0 : i32
    %c0_i32_0 = arith.constant 0 : i32
    %c0_i32_1 = arith.constant 0 : i32
    return %c0_i32, %c0_i32_0 : i32, i32
  }
  func.func @transform_5(%arg0: i32) -> (i32, i32) {
    %c0_i32 = arith.constant 0 : i32
    %c0_i32_0 = arith.constant 0 : i32
    %c0_i32_1 = arith.constant 0 : i32
    return %c0_i32, %c0_i32_0 : i32, i32
  }
  func.func @transform_6(%arg0: i32) -> (i32, i32) {
    %c0_i32 = arith.constant 0 : i32
    %c0_i32_0 = arith.constant 0 : i32
    %c0_i32_1 = arith.constant 0 : i32
    return %c0_i32, %c0_i32_0 : i32, i32
  }
  func.func @transform_7(%arg0: i32) -> (i32, i32) {
    %c0_i32 = arith.constant 0 : i32
    %c0_i32_0 = arith.constant 0 : i32
    return %arg0, %c0_i32 : i32, i32
  }
}

</mosaic_0001>

<llo_original>
// kernel: tpu_custom_call.1
$region0: #{tpu_custom_call.1}
  #allocation0 [shape = 'u32[]', space=smem, size = 0x4, offset = 0x4, fixed_abs, tag = 'smem constant byte address 0x4 - core index']
  #allocation1 [shape = 'u32[144,128]{1,0:T(1,128)}', space=vmem, size = 0x12000, scoped, tag = 'internal scratch']
  %s0 = inlined_call_operand.hbm [shape: f32[16,256], index: 0, kind: input, shape index: {}]
  %s1 = inlined_call_operand.hbm [shape: bf16[256,768], index: 1, kind: input, shape index: {}]
  %s2 = inlined_call_operand.hbm [shape: f32[1,768], index: 2, kind: input, shape index: {}]
  %s3 = inlined_call_operand.hbm [shape: bf16[256,256], index: 3, kind: input, shape index: {}]
  %s4 = inlined_call_operand.vmem [shape: f32[1,256], index: 4, kind: input, shape index: {}]
  %s5 = inlined_call_operand.vmem [shape: f32[1,256], index: 5, kind: input, shape index: {}]
  %s6 = inlined_call_operand.vmem [shape: f32[1,256], index: 6, kind: input, shape index: {}]
  %s7 = inlined_call_operand.hbm [shape: f32[16,256], index: 7, kind: output, shape index: {}]
  %s8 = sld [smem:[#allocation0]]
  $region54: #{tpu_custom_call.1} parent=0
    _
  %s10 = ssub.s32 1, %s8
  %s11 = scalar_select 0, %s10, %s8
  $region1: #{tpu_custom_call.1} parent=0
    #allocation2 [shape = 'u8[16384]{0}', space=vmem, size = 0x4000, scoped, tag = 'input window, operand 0, single buffered']
    #allocation3 [shape = 's32[1]{0}', space=sflag, size = 0x4, scoped, tag = 'scoped memory for tpu_custom_call.1']
    #allocation4 [shape = 's32[1]{0}', space=sflag, size = 0x4, scoped, tag = 'scoped memory for tpu_custom_call.1']
    #allocation5 [shape = 'u8[393216]{0}', space=vmem, size = 0x60000, scoped, tag = 'input window, operand 1, single buffered']
    #allocation6 [shape = 's32[1]{0}', space=sflag, size = 0x4, scoped, tag = 'scoped memory for tpu_custom_call.1']
    #allocation7 [shape = 'u8[3072]{0}', space=vmem, size = 0xc00, scoped, tag = 'input window, operand 2, single buffered']
    #allocation8 [shape = 'u8[131072]{0}', space=vmem, size = 0x20000, scoped, tag = 'input window, operand 3, single buffered']
    #allocation9 [shape = 's32[1]{0}', space=sflag, size = 0x4, scoped, tag = 'scoped memory for tpu_custom_call.1']
    #allocation10 [shape = 'u8[16384]{0}', space=vmem, size = 0x4000, scoped, tag = 'output window, operand 0, single buffered']
    %12 = vsyncpa [#allocation3], 0
    %13 = vsyncpa [#allocation6], 0
    %14 = vsyncpa [#allocation9], 0
    %15 = vsyncpa [#allocation4], 0
    // Predicated region
    $region2: #{tpu_custom_call.1} parent=1 // pred_check
      _
    $region3: #{tpu_custom_call.1} parent=1 // pred_check_branch
      %17 = sbr.rel (0) target = $region5
    $region4: #{tpu_custom_call.1} parent=1 // pred_region
      %s19 = ssub.s32 512, 512
      %20 = vsyncadd [#allocation3], %s19
      %s21 = sshll.u32 [#allocation2], 4
      %s22 = int_to_ptr.vmem [resolvable:$true] %s21
      %27 = dma.hbm_to_vmem [thread:$0]  %s0, 512, %s22, [#allocation3], 256, 256, 16
    $region5: #{tpu_custom_call.1} parent=1 // pred_fallthru
      _
    // Predicated region
    $region6: #{tpu_custom_call.1} parent=1 // pred_check
      _
    $region7: #{tpu_custom_call.1} parent=1 // pred_check_branch
      %29 = sbr.rel (0) target = $region9
    $region8: #{tpu_custom_call.1} parent=1 // pred_region
      %s31 = ssub.s32 12288, 12288
      %32 = vsyncadd [#allocation6], %s31
      %s33 = sshll.u32 [#allocation5], 4
      %s34 = int_to_ptr.vmem [resolvable:$true] %s33
      %39 = dma.hbm_to_vmem [thread:$0]  %s1, 12288, %s34, [#allocation6], 384, 384, 24
    $region9: #{tpu_custom_call.1} parent=1 // pred_fallthru
      _
    // Predicated region
    $region10: #{tpu_custom_call.1} parent=1 // pred_check
      _
    $region11: #{tpu_custom_call.1} parent=1 // pred_check_branch
      %41 = sbr.rel (0) target = $region13
    $region12: #{tpu_custom_call.1} parent=1 // pred_region
      %s43 = ssub.s32 96, 96
      %44 = vsyncadd [#allocation6], %s43
      %s46 = sshll.u32 [#allocation7], 4
      %s47 = int_to_ptr.vmem [resolvable:$true] %s46
      %49 = dma.hbm_to_vmem [thread:$0]  %s2, 96, %s47, [#allocation6]
    $region13: #{tpu_custom_call.1} parent=1 // pred_fallthru
      _
    // Predicated region
    $region14: #{tpu_custom_call.1} parent=1 // pred_check
      _
    $region15: #{tpu_custom_call.1} parent=1 // pred_check_branch
      %51 = sbr.rel (0) target = $region17
    $region16: #{tpu_custom_call.1} parent=1 // pred_region
      %s53 = ssub.s32 4096, 4096
      %54 = vsyncadd [#allocation9], %s53
      %s55 = sshll.u32 [#allocation8], 4
      %s56 = int_to_ptr.vmem [resolvable:$true] %s55
      %61 = dma.hbm_to_vmem [thread:$0]  %s3, 4096, %s56, [#allocation9], 128, 128, 8
    $region17: #{tpu_custom_call.1} parent=1 // pred_fallthru
      _
    // Predicated region
    $region18: #{tpu_custom_call.1} parent=1 // pred_check
      _
    $region19: #{tpu_custom_call.1} parent=1 // pred_check_branch
      %63 = sbr.rel (0) target = $region21
    $region20: #{tpu_custom_call.1} parent=1 // pred_region
      _
    $region21: #{tpu_custom_call.1} parent=1 // pred_fallthru
      _
    // Predicated region
    $region22: #{tpu_custom_call.1} parent=1 // pred_check
      _
    $region23: #{tpu_custom_call.1} parent=1 // pred_check_branch
      %65 = sbr.rel (0) target = $region25
    $region24: #{tpu_custom_call.1} parent=1 // pred_region
      _
    $region25: #{tpu_custom_call.1} parent=1 // pred_fallthru
      _
    // Predicated region
    $region26: #{tpu_custom_call.1} parent=1 // pred_check
      _
    $region27: #{tpu_custom_call.1} parent=1 // pred_check_branch
      %67 = sbr.rel (0) target = $region29
    $region28: #{tpu_custom_call.1} parent=1 // pred_region
      _
    $region29: #{tpu_custom_call.1} parent=1 // pred_fallthru
      _
    // Predicated region
    $region30: #{tpu_custom_call.1} parent=1 // pred_check
      _
    $region31: #{tpu_custom_call.1} parent=1 // pred_check_branch
      %69 = sbr.rel (0) target = $region33
    $region32: #{tpu_custom_call.1} parent=1 // pred_region
      %70 = dma.done [#allocation3], 512
    $region33: #{tpu_custom_call.1} parent=1 // pred_fallthru
      _
    // Predicated region
    $region34: #{tpu_custom_call.1} parent=1 // pred_check
      _
    $region35: #{tpu_custom_call.1} parent=1 // pred_check_branch
      %72 = sbr.rel (0) target = $region37
    $region36: #{tpu_custom_call.1} parent=1 // pred_region
      %73 = dma.done [#allocation6], 12288
    $region37: #{tpu_custom_call.1} parent=1 // pred_fallthru
      _
    // Predicated region
    $region38: #{tpu_custom_call.1} parent=1 // pred_check
      _
    $region39: #{tpu_custom_call.1} parent=1 // pred_check_branch
      %75 = sbr.rel (0) target = $region41
    $region40: #{tpu_custom_call.1} parent=1 // pred_region
      %76 = dma.done [#allocation6], 96
    $region41: #{tpu_custom_call.1} parent=1 // pred_fallthru
      _
    // Predicated region
    $region42: #{tpu_custom_call.1} parent=1 // pred_check
      _
    $region43: #{tpu_custom_call.1} parent=1 // pred_check_branch
      %78 = sbr.rel (0) target = $region45
    $region44: #{tpu_custom_call.1} parent=1 // pred_region
      %79 = dma.done [#allocation9], 4096
    $region45: #{tpu_custom_call.1} parent=1 // pred_fallthru
      _
    %v81 = vld [vmem:[#allocation2] sm:$0xff]
    %v82 = vld [vmem:[#allocation2 + $0x8] sm:$0xff]
    %v83 = vld [vmem:[#allocation2 + $0x10] sm:$0xff]
    %v84 = vld [vmem:[#allocation2 + $0x18] sm:$0xff]
    %v85 = vpack.c.bf16 %v83, %v81
    %v86 = vpack.c.bf16 %v84, %v82
    %v87 = vld [vmem:[#allocation5] sm:$0xff]
    %v88 = vld [vmem:[#allocation5 + $0x8] sm:$0xff]
    %v89 = vld [vmem:[#allocation5 + $0x10] sm:$0xff]
    %v90 = vld [vmem:[#allocation5 + $0x18] sm:$0xff]
    %v91 = vld [vmem:[#allocation5 + $0x20] sm:$0xff]
    %v92 = vld [vmem:[#allocation5 + $0x28] sm:$0xff]
    %v93 = vld [vmem:[#allocation5 + $0x30] sm:$0xff]
    %v94 = vld [vmem:[#allocation5 + $0x38] sm:$0xff]
    %v95 = vld [vmem:[#allocation5 + $0x40] sm:$0xff]
    %v96 = vld [vmem:[#allocation5 + $0x48] sm:$0xff]
    %v97 = vld [vmem:[#allocation5 + $0x50] sm:$0xff]
    %v98 = vld [vmem:[#allocation5 + $0x58] sm:$0xff]
    %v99 = vld [vmem:[#allocation5 + $0x60] sm:$0xff]
    %v100 = vld [vmem:[#allocation5 + $0x68] sm:$0xff]
    %v101 = vld [vmem:[#allocation5 + $0x70] sm:$0xff]
    %v102 = vld [vmem:[#allocation5 + $0x78] sm:$0xff]
    %v103 = vld [vmem:[#allocation5 + $0x80] sm:$0xff]
    %v104 = vld [vmem:[#allocation5 + $0x88] sm:$0xff]
    %v105 = vld [vmem:[#allocation5 + $0x90] sm:$0xff]
    %v106 = vld [vmem:[#allocation5 + $0x98] sm:$0xff]
    %v107 = vld [vmem:[#allocation5 + $0xa0] sm:$0xff]
    %v108 = vld [vmem:[#allocation5 + $0xa8] sm:$0xff]
    %v109 = vld [vmem:[#allocation5 + $0xb0] sm:$0xff]
    %v110 = vld [vmem:[#allocation5 + $0xb8] sm:$0xff]
    %v111 = vld [vmem:[#allocation5 + $0xc0] sm:$0xff]
    %v112 = vld [vmem:[#allocation5 + $0xc8] sm:$0xff]
    %v113 = vld [vmem:[#allocation5 + $0xd0] sm:$0xff]
    %v114 = vld [vmem:[#allocation5 + $0xd8] sm:$0xff]
    %v115 = vld [vmem:[#allocation5 + $0xe0] sm:$0xff]
    %v116 = vld [vmem:[#allocation5 + $0xe8] sm:$0xff]
    %v117 = vld [vmem:[#allocation5 + $0xf0] sm:$0xff]
    %v118 = vld [vmem:[#allocation5 + $0xf8] sm:$0xff]
    %v119 = vld [vmem:[#allocation5 + $0x100] sm:$0xff]
    %v120 = vld [vmem:[#allocation5 + $0x108] sm:$0xff]
    %v121 = vld [vmem:[#allocation5 + $0x110] sm:$0xff]
    %v122 = vld [vmem:[#allocation5 + $0x118] sm:$0xff]
    %v123 = vld [vmem:[#allocation5 + $0x120] sm:$0xff]
    %v124 = vld [vmem:[#allocation5 + $0x128] sm:$0xff]
    %v125 = vld [vmem:[#allocation5 + $0x130] sm:$0xff]
    %v126 = vld [vmem:[#allocation5 + $0x138] sm:$0xff]
    %v127 = vld [vmem:[#allocation5 + $0x140] sm:$0xff]
    %v128 = vld [vmem:[#allocation5 + $0x148] sm:$0xff]
    %v129 = vld [vmem:[#allocation5 + $0x150] sm:$0xff]
    %v130 = vld [vmem:[#allocation5 + $0x158] sm:$0xff]
    %v131 = vld [vmem:[#allocation5 + $0x160] sm:$0xff]
    %v132 = vld [vmem:[#allocation5 + $0x168] sm:$0xff]
    %v133 = vld [vmem:[#allocation5 + $0x170] sm:$0xff]
    %v134 = vld [vmem:[#allocation5 + $0x178] sm:$0xff]
    %v135 = vld [vmem:[#allocation5 + $0x180] sm:$0xff]
    %v136 = vld [vmem:[#allocation5 + $0x188] sm:$0xff]
    %v137 = vld [vmem:[#allocation5 + $0x190] sm:$0xff]
    %v138 = vld [vmem:[#allocation5 + $0x198] sm:$0xff]
    %v139 = vld [vmem:[#allocation5 + $0x1a0] sm:$0xff]
    %v140 = vld [vmem:[#allocation5 + $0x1a8] sm:$0xff]
    %v141 = vld [vmem:[#allocation5 + $0x1b0] sm:$0xff]
    %v142 = vld [vmem:[#allocation5 + $0x1b8] sm:$0xff]
    %v143 = vld [vmem:[#allocation5 + $0x1c0] sm:$0xff]
    %v144 = vld [vmem:[#allocation5 + $0x1c8] sm:$0xff]
    %v145 = vld [vmem:[#allocation5 + $0x1d0] sm:$0xff]
    %v146 = vld [vmem:[#allocation5 + $0x1d8] sm:$0xff]
    %v147 = vld [vmem:[#allocation5 + $0x1e0] sm:$0xff]
    %v148 = vld [vmem:[#allocation5 + $0x1e8] sm:$0xff]
    %v149 = vld [vmem:[#allocation5 + $0x1f0] sm:$0xff]
    %v150 = vld [vmem:[#allocation5 + $0x1f8] sm:$0xff]
    %v151 = vld [vmem:[#allocation5 + $0x200] sm:$0xff]
    %v152 = vld [vmem:[#allocation5 + $0x208] sm:$0xff]
    %v153 = vld [vmem:[#allocation5 + $0x210] sm:$0xff]
    %v154 = vld [vmem:[#allocation5 + $0x218] sm:$0xff]
    %v155 = vld [vmem:[#allocation5 + $0x220] sm:$0xff]
    %v156 = vld [vmem:[#allocation5 + $0x228] sm:$0xff]
    %v157 = vld [vmem:[#allocation5 + $0x230] sm:$0xff]
    %v158 = vld [vmem:[#allocation5 + $0x238] sm:$0xff]
    %v159 = vld [vmem:[#allocation5 + $0x240] sm:$0xff]
    %v160 = vld [vmem:[#allocation5 + $0x248] sm:$0xff]
    %v161 = vld [vmem:[#allocation5 + $0x250] sm:$0xff]
    %v162 = vld [vmem:[#allocation5 + $0x258] sm:$0xff]
    %v163 = vld [vmem:[#allocation5 + $0x260] sm:$0xff]
    %v164 = vld [vmem:[#allocation5 + $0x268] sm:$0xff]
    %v165 = vld [vmem:[#allocation5 + $0x270] sm:$0xff]
    %v166 = vld [vmem:[#allocation5 + $0x278] sm:$0xff]
    %v167 = vld [vmem:[#allocation5 + $0x280] sm:$0xff]
    %v168 = vld [vmem:[#allocation5 + $0x288] sm:$0xff]
    %v169 = vld [vmem:[#allocation5 + $0x290] sm:$0xff]
    %v170 = vld [vmem:[#allocation5 + $0x298] sm:$0xff]
    %v171 = vld [vmem:[#allocation5 + $0x2a0] sm:$0xff]
    %v172 = vld [vmem:[#allocation5 + $0x2a8] sm:$0xff]
    %v173 = vld [vmem:[#allocation5 + $0x2b0] sm:$0xff]
    %v174 = vld [vmem:[#allocation5 + $0x2b8] sm:$0xff]
    %v175 = vld [vmem:[#allocation5 + $0x2c0] sm:$0xff]
    %v176 = vld [vmem:[#allocation5 + $0x2c8] sm:$0xff]
    %v177 = vld [vmem:[#allocation5 + $0x2d0] sm:$0xff]
    %v178 = vld [vmem:[#allocation5 + $0x2d8] sm:$0xff]
    %v179 = vld [vmem:[#allocation5 + $0x2e0] sm:$0xff]
    %v180 = vld [vmem:[#allocation5 + $0x2e8] sm:$0xff]
    %v181 = vld [vmem:[#allocation5 + $0x2f0] sm:$0xff]
    %v182 = vld [vmem:[#allocation5 + $0x2f8] sm:$0xff]
    %v183 = vld [vmem:[#allocation7] sm:$0x3f]
    %v185 = vlaneseq
    %v186 = vshrl.u32 %v185, 7
    %v187 = vsub.s32 0, %v186
    %v188 = vrot.slane %v183, %v187
    %v189 = vlaneseq
    %v190 = vshrl.u32 %v189, 7
    %v191 = vsub.s32 1, %v190
    %v192 = vrot.slane %v183, %v191
    %v193 = vlaneseq
    %v194 = vshrl.u32 %v193, 7
    %v195 = vsub.s32 2, %v194
    %v196 = vrot.slane %v183, %v195
    %v197 = vlaneseq
    %v198 = vshrl.u32 %v197, 7
    %v199 = vsub.s32 3, %v198
    %v200 = vrot.slane %v183, %v199
    %v201 = vlaneseq
    %v202 = vshrl.u32 %v201, 7
    %v203 = vsub.s32 4, %v202
    %v204 = vrot.slane %v183, %v203
    %v205 = vlaneseq
    %v206 = vshrl.u32 %v205, 7
    %v207 = vsub.s32 5, %v206
    %v208 = vrot.slane %v183, %v207
    %v311 = vunpack.c.l.b16 %v87
    %v312 = vunpack.c.h.b16 %v87
    %v313 = vunpack.c.l.b16 %v88
    %v314 = vunpack.c.h.b16 %v88
    %v315 = vunpack.c.l.b16 %v89
    %v316 = vunpack.c.h.b16 %v89
    %v317 = vunpack.c.l.b16 %v90
    %v318 = vunpack.c.h.b16 %v90
    %v319 = vunpack.c.l.b16 %v91
    %v320 = vunpack.c.h.b16 %v91
    %v321 = vunpack.c.l.b16 %v92
    %v322 = vunpack.c.h.b16 %v92
    %v323 = vunpack.c.l.b16 %v93
    %v324 = vunpack.c.h.b16 %v93
    %v325 = vunpack.c.l.b16 %v94
    %v326 = vunpack.c.h.b16 %v94
    %v327 = vunpack.c.l.b16 %v95
    %v328 = vunpack.c.h.b16 %v95
    %v329 = vunpack.c.l.b16 %v96
    %v330 = vunpack.c.h.b16 %v96
    %v331 = vunpack.c.l.b16 %v97
    %v332 = vunpack.c.h.b16 %v97
    %v333 = vunpack.c.l.b16 %v98
    %v334 = vunpack.c.h.b16 %v98
    %v335 = vunpack.c.l.b16 %v99
    %v336 = vunpack.c.h.b16 %v99
    %v337 = vunpack.c.l.b16 %v100
    %v338 = vunpack.c.h.b16 %v100
    %v339 = vunpack.c.l.b16 %v101
    %v340 = vunpack.c.h.b16 %v101
    %v341 = vunpack.c.l.b16 %v102
    %v342 = vunpack.c.h.b16 %v102
    %v343 = vunpack.c.l.b16 %v103
    %v344 = vunpack.c.h.b16 %v103
    %v345 = vunpack.c.l.b16 %v104
    %v346 = vunpack.c.h.b16 %v104
    %v347 = vunpack.c.l.b16 %v105
    %v348 = vunpack.c.h.b16 %v105
    %v349 = vunpack.c.l.b16 %v106
    %v350 = vunpack.c.h.b16 %v106
    %v351 = vunpack.c.l.b16 %v107
    %v352 = vunpack.c.h.b16 %v107
    %v353 = vunpack.c.l.b16 %v108
    %v354 = vunpack.c.h.b16 %v108
    %v355 = vunpack.c.l.b16 %v109
    %v356 = vunpack.c.h.b16 %v109
    %v357 = vunpack.c.l.b16 %v110
    %v358 = vunpack.c.h.b16 %v110
    %v359 = vunpack.c.l.b16 %v111
    %v360 = vunpack.c.h.b16 %v111
    %v361 = vunpack.c.l.b16 %v112
    %v362 = vunpack.c.h.b16 %v112
    %v363 = vunpack.c.l.b16 %v113
    %v364 = vunpack.c.h.b16 %v113
    %v365 = vunpack.c.l.b16 %v114
    %v366 = vunpack.c.h.b16 %v114
    %v367 = vunpack.c.l.b16 %v115
    %v368 = vunpack.c.h.b16 %v115
    %v369 = vunpack.c.l.b16 %v116
    %v370 = vunpack.c.h.b16 %v116
    %v371 = vunpack.c.l.b16 %v117
    %v372 = vunpack.c.h.b16 %v117
    %v373 = vunpack.c.l.b16 %v118
    %v374 = vunpack.c.h.b16 %v118
    %v375 = vunpack.c.l.b16 %v119
    %v376 = vunpack.c.h.b16 %v119
    %v377 = vunpack.c.l.b16 %v120
    %v378 = vunpack.c.h.b16 %v120
    %v379 = vunpack.c.l.b16 %v121
    %v380 = vunpack.c.h.b16 %v121
    %v381 = vunpack.c.l.b16 %v122
    %v382 = vunpack.c.h.b16 %v122
    %v383 = vunpack.c.l.b16 %v123
    %v384 = vunpack.c.h.b16 %v123
    %v385 = vunpack.c.l.b16 %v124
    %v386 = vunpack.c.h.b16 %v124
    %v387 = vunpack.c.l.b16 %v125
    %v388 = vunpack.c.h.b16 %v125
    %v389 = vunpack.c.l.b16 %v126
    %v390 = vunpack.c.h.b16 %v126
    %v391 = vunpack.c.l.b16 %v127
    %v392 = vunpack.c.h.b16 %v127
    %v393 = vunpack.c.l.b16 %v128
    %v394 = vunpack.c.h.b16 %v128
    %v395 = vunpack.c.l.b16 %v129
    %v396 = vunpack.c.h.b16 %v129
    %v397 = vunpack.c.l.b16 %v130
    %v398 = vunpack.c.h.b16 %v130
    %v399 = vunpack.c.l.b16 %v131
    %v400 = vunpack.c.h.b16 %v131
    %v401 = vunpack.c.l.b16 %v132
    %v402 = vunpack.c.h.b16 %v132
    %v403 = vunpack.c.l.b16 %v133
    %v404 = vunpack.c.h.b16 %v133
    %v405 = vunpack.c.l.b16 %v134
    %v406 = vunpack.c.h.b16 %v134
    %v407 = vunpack.c.l.b16 %v135
    %v408 = vunpack.c.h.b16 %v135
    %v409 = vunpack.c.l.b16 %v136
    %v410 = vunpack.c.h.b16 %v136
    %v411 = vunpack.c.l.b16 %v137
    %v412 = vunpack.c.h.b16 %v137
    %v413 = vunpack.c.l.b16 %v138
    %v414 = vunpack.c.h.b16 %v138
    %v415 = vunpack.c.l.b16 %v139
    %v416 = vunpack.c.h.b16 %v139
    %v417 = vunpack.c.l.b16 %v140
    %v418 = vunpack.c.h.b16 %v140
    %v419 = vunpack.c.l.b16 %v141
    %v420 = vunpack.c.h.b16 %v141
    %v421 = vunpack.c.l.b16 %v142
    %v422 = vunpack.c.h.b16 %v142
    %v423 = vunpack.c.l.b16 %v143
    %v424 = vunpack.c.h.b16 %v143
    %v425 = vunpack.c.l.b16 %v144
    %v426 = vunpack.c.h.b16 %v144
    %v427 = vunpack.c.l.b16 %v145
    %v428 = vunpack.c.h.b16 %v145
    %v429 = vunpack.c.l.b16 %v146
    %v430 = vunpack.c.h.b16 %v146
    %v431 = vunpack.c.l.b16 %v147
    %v432 = vunpack.c.h.b16 %v147
    %v433 = vunpack.c.l.b16 %v148
    %v434 = vunpack.c.h.b16 %v148
    %v435 = vunpack.c.l.b16 %v149
    %v436 = vunpack.c.h.b16 %v149
    %v437 = vunpack.c.l.b16 %v150
    %v438 = vunpack.c.h.b16 %v150
    %v439 = vunpack.c.l.b16 %v151
    %v440 = vunpack.c.h.b16 %v151
    %v441 = vunpack.c.l.b16 %v152
    %v442 = vunpack.c.h.b16 %v152
    %v443 = vunpack.c.l.b16 %v153
    %v444 = vunpack.c.h.b16 %v153
    %v445 = vunpack.c.l.b16 %v154
    %v446 = vunpack.c.h.b16 %v154
    %v447 = vunpack.c.l.b16 %v155
    %v448 = vunpack.c.h.b16 %v155
    %v449 = vunpack.c.l.b16 %v156
    %v450 = vunpack.c.h.b16 %v156
    %v451 = vunpack.c.l.b16 %v157
    %v452 = vunpack.c.h.b16 %v157
    %v453 = vunpack.c.l.b16 %v158
    %v454 = vunpack.c.h.b16 %v158
    %v455 = vunpack.c.l.b16 %v159
    %v456 = vunpack.c.h.b16 %v159
    %v457 = vunpack.c.l.b16 %v160
    %v458 = vunpack.c.h.b16 %v160
    %v459 = vunpack.c.l.b16 %v161
    %v460 = vunpack.c.h.b16 %v161
    %v461 = vunpack.c.l.b16 %v162
    %v462 = vunpack.c.h.b16 %v162
    %v463 = vunpack.c.l.b16 %v163
    %v464 = vunpack.c.h.b16 %v163
    %v465 = vunpack.c.l.b16 %v164
    %v466 = vunpack.c.h.b16 %v164
    %v467 = vunpack.c.l.b16 %v165
    %v468 = vunpack.c.h.b16 %v165
    %v469 = vunpack.c.l.b16 %v166
    %v470 = vunpack.c.h.b16 %v166
    %v471 = vunpack.c.l.b16 %v167
    %v472 = vunpack.c.h.b16 %v167
    %v473 = vunpack.c.l.b16 %v168
    %v474 = vunpack.c.h.b16 %v168
    %v475 = vunpack.c.l.b16 %v169
    %v476 = vunpack.c.h.b16 %v169
    %v477 = vunpack.c.l.b16 %v170
    %v478 = vunpack.c.h.b16 %v170
    %v479 = vunpack.c.l.b16 %v171
    %v480 = vunpack.c.h.b16 %v171
    %v481 = vunpack.c.l.b16 %v172
    %v482 = vunpack.c.h.b16 %v172
    %v483 = vunpack.c.l.b16 %v173
    %v484 = vunpack.c.h.b16 %v173
    %v485 = vunpack.c.l.b16 %v174
    %v486 = vunpack.c.h.b16 %v174
    %v487 = vunpack.c.l.b16 %v175
    %v488 = vunpack.c.h.b16 %v175
    %v489 = vunpack.c.l.b16 %v176
    %v490 = vunpack.c.h.b16 %v176
    %v491 = vunpack.c.l.b16 %v177
    %v492 = vunpack.c.h.b16 %v177
    %v493 = vunpack.c.l.b16 %v178
    %v494 = vunpack.c.h.b16 %v178
    %v495 = vunpack.c.l.b16 %v179
    %v496 = vunpack.c.h.b16 %v179
    %v497 = vunpack.c.l.b16 %v180
    %v498 = vunpack.c.h.b16 %v180
    %v499 = vunpack.c.l.b16 %v181
    %v500 = vunpack.c.h.b16 %v181
    %v501 = vunpack.c.l.b16 %v182
    %v502 = vunpack.c.h.b16 %v182
    %v503 = vpack.c.b16 %v317, %v311
    %v504 = vpack.c.b16 %v318, %v312
    %v505 = vpack.c.b16 %v319, %v313
    %v506 = vpack.c.b16 %v320, %v314
    %v507 = vpack.c.b16 %v321, %v315
    %v508 = vpack.c.b16 %v322, %v316
    %v509 = vpack.c.b16 %v329, %v323
    %v510 = vpack.c.b16 %v330, %v324
    %v511 = vpack.c.b16 %v331, %v325
    %v512 = vpack.c.b16 %v332, %v326
    %v513 = vpack.c.b16 %v333, %v327
    %v514 = vpack.c.b16 %v334, %v328
    %v515 = vpack.c.b16 %v341, %v335
    %v516 = vpack.c.b16 %v342, %v336
    %v517 = vpack.c.b16 %v343, %v337
    %v518 = vpack.c.b16 %v344, %v338
    %v519 = vpack.c.b16 %v345, %v339
    %v520 = vpack.c.b16 %v346, %v340
    %v521 = vpack.c.b16 %v353, %v347
    %v522 = vpack.c.b16 %v354, %v348
    %v523 = vpack.c.b16 %v355, %v349
    %v524 = vpack.c.b16 %v356, %v350
    %v525 = vpack.c.b16 %v357, %v351
    %v526 = vpack.c.b16 %v358, %v352
    %v527 = vpack.c.b16 %v365, %v359
    %v528 = vpack.c.b16 %v366, %v360
    %v529 = vpack.c.b16 %v367, %v361
    %v530 = vpack.c.b16 %v368, %v362
    %v531 = vpack.c.b16 %v369, %v363
    %v532 = vpack.c.b16 %v370, %v364
    %v533 = vpack.c.b16 %v377, %v371
    %v534 = vpack.c.b16 %v378, %v372
    %v535 = vpack.c.b16 %v379, %v373
    %v536 = vpack.c.b16 %v380, %v374
    %v537 = vpack.c.b16 %v381, %v375
    %v538 = vpack.c.b16 %v382, %v376
    %v539 = vpack.c.b16 %v389, %v383
    %v540 = vpack.c.b16 %v390, %v384
    %v541 = vpack.c.b16 %v391, %v385
    %v542 = vpack.c.b16 %v392, %v386
    %v543 = vpack.c.b16 %v393, %v387
    %v544 = vpack.c.b16 %v394, %v388
    %v545 = vpack.c.b16 %v401, %v395
    %v546 = vpack.c.b16 %v402, %v396
    %v547 = vpack.c.b16 %v403, %v397
    %v548 = vpack.c.b16 %v404, %v398
    %v549 = vpack.c.b16 %v405, %v399
    %v550 = vpack.c.b16 %v406, %v400
    %v551 = vpack.c.b16 %v413, %v407
    %v552 = vpack.c.b16 %v414, %v408
    %v553 = vpack.c.b16 %v415, %v409
    %v554 = vpack.c.b16 %v416, %v410
    %v555 = vpack.c.b16 %v417, %v411
    %v556 = vpack.c.b16 %v418, %v412
    %v557 = vpack.c.b16 %v425, %v419
    %v558 = vpack.c.b16 %v426, %v420
    %v559 = vpack.c.b16 %v427, %v421
    %v560 = vpack.c.b16 %v428, %v422
    %v561 = vpack.c.b16 %v429, %v423
    %v562 = vpack.c.b16 %v430, %v424
    %v563 = vpack.c.b16 %v437, %v431
    %v564 = vpack.c.b16 %v438, %v432
    %v565 = vpack.c.b16 %v439, %v433
    %v566 = vpack.c.b16 %v440, %v434
    %v567 = vpack.c.b16 %v441, %v435
    %v568 = vpack.c.b16 %v442, %v436
    %v569 = vpack.c.b16 %v449, %v443
    %v570 = vpack.c.b16 %v450, %v444
    %v571 = vpack.c.b16 %v451, %v445
    %v572 = vpack.c.b16 %v452, %v446
    %v573 = vpack.c.b16 %v453, %v447
    %v574 = vpack.c.b16 %v454, %v448
    %v575 = vpack.c.b16 %v461, %v455
    %v576 = vpack.c.b16 %v462, %v456
    %v577 = vpack.c.b16 %v463, %v457
    %v578 = vpack.c.b16 %v464, %v458
    %v579 = vpack.c.b16 %v465, %v459
    %v580 = vpack.c.b16 %v466, %v460
    %v581 = vpack.c.b16 %v473, %v467
    %v582 = vpack.c.b16 %v474, %v468
    %v583 = vpack.c.b16 %v475, %v469
    %v584 = vpack.c.b16 %v476, %v470
    %v585 = vpack.c.b16 %v477, %v471
    %v586 = vpack.c.b16 %v478, %v472
    %v587 = vpack.c.b16 %v485, %v479
    %v588 = vpack.c.b16 %v486, %v480
    %v589 = vpack.c.b16 %v487, %v481
    %v590 = vpack.c.b16 %v488, %v482
    %v591 = vpack.c.b16 %v489, %v483
    %v592 = vpack.c.b16 %v490, %v484
    %v593 = vpack.c.b16 %v497, %v491
    %v594 = vpack.c.b16 %v498, %v492
    %v595 = vpack.c.b16 %v499, %v493
    %v596 = vpack.c.b16 %v500, %v494
    %v597 = vpack.c.b16 %v501, %v495
    %v598 = vpack.c.b16 %v502, %v496
    %695 = vmatprep.subr.bf16.mxu0 %v546
    %696 = vmatpush1.bf16.msra.mxu0 %v545
    %697 = vmatprep.subr.bf16.mxu0 %v540
    %698 = vmatpush1.bf16.msra.mxu0 %v539
    %699 = vmatprep.subr.bf16.mxu0 %v534
    %700 = vmatpush1.bf16.msra.mxu0 %v533
    %701 = vmatprep.subr.bf16.mxu0 %v528
    %702 = vmatpush1.bf16.msra.mxu0 %v527
    %703 = vmatprep.subr.bf16.mxu0 %v522
    %704 = vmatpush1.bf16.msra.mxu0 %v521
    %705 = vmatprep.subr.bf16.mxu0 %v516
    %706 = vmatpush1.bf16.msra.mxu0 %v515
    %707 = vmatprep.subr.bf16.mxu0 %v510
    %708 = vmatpush1.bf16.msra.mxu0 %v509
    %709 = vmatprep.subr.bf16.mxu0 %v504
    %710 = vmatpush1.bf16.msra.mxu0 %v503
    %711 = vmatprep.subr.bf16.mxu0 %v594
    %712 = vmatpush2.bf16.msra.mxu0 %v593
    %713 = vmatprep.subr.bf16.mxu0 %v588
    %714 = vmatpush2.bf16.msra.mxu0 %v587
    %715 = vmatprep.subr.bf16.mxu0 %v582
    %716 = vmatpush2.bf16.msra.mxu0 %v581
    %717 = vmatprep.subr.bf16.mxu0 %v576
    %718 = vmatpush2.bf16.msra.mxu0 %v575
    %719 = vmatprep.subr.bf16.mxu0 %v570
    %720 = vmatpush2.bf16.msra.mxu0 %v569
    %721 = vmatprep.subr.bf16.mxu0 %v564
    %722 = vmatpush2.bf16.msra.mxu0 %v563
    %723 = vmatprep.subr.bf16.mxu0 %v558
    %724 = vmatpush2.bf16.msra.mxu0 %v557
    %725 = vmatprep.subr.bf16.mxu0 %v552
    %726 = vmatpush2.bf16.msra.mxu0 %v551
    %727 = vmatprep.mubr.bf16.mxu0 %v86
    %728 = vmatmul.mubr.bf16.gmra.mxu0 %v85
    %v729 = vpop.f32.mrf.mxu0
    %v730 = vadd.f32 %v188, %v729
    %v731 = vpop.f32.mrf.mxu0
    %v732 = vadd.f32 %v192, %v731
    %v733 = vpop.f32.mrf.mxu0
    %v734 = vadd.f32 %v188, %v733
    %v735 = vpop.f32.mrf.mxu0
    %v736 = vadd.f32 %v192, %v735
    %737 = vdwg.mxu0
    %738 = vmatprep.subr.bf16.mxu0 %v548
    %739 = vmatpush1.bf16.msra.mxu0 %v547
    %740 = vmatprep.subr.bf16.mxu0 %v542
    %741 = vmatpush1.bf16.msra.mxu0 %v541
    %742 = vmatprep.subr.bf16.mxu0 %v536
    %743 = vmatpush1.bf16.msra.mxu0 %v535
    %744 = vmatprep.subr.bf16.mxu0 %v530
    %745 = vmatpush1.bf16.msra.mxu0 %v529
    %746 = vmatprep.subr.bf16.mxu0 %v524
    %747 = vmatpush1.bf16.msra.mxu0 %v523
    %748 = vmatprep.subr.bf16.mxu0 %v518
    %749 = vmatpush1.bf16.msra.mxu0 %v517
    %750 = vmatprep.subr.bf16.mxu0 %v512
    %751 = vmatpush1.bf16.msra.mxu0 %v511
    %752 = vmatprep.subr.bf16.mxu0 %v506
    %753 = vmatpush1.bf16.msra.mxu0 %v505
    %754 = vmatprep.subr.bf16.mxu0 %v596
    %755 = vmatpush2.bf16.msra.mxu0 %v595
    %756 = vmatprep.subr.bf16.mxu0 %v590
    %757 = vmatpush2.bf16.msra.mxu0 %v589
    %758 = vmatprep.subr.bf16.mxu0 %v584
    %759 = vmatpush2.bf16.msra.mxu0 %v583
    %760 = vmatprep.subr.bf16.mxu0 %v578
    %761 = vmatpush2.bf16.msra.mxu0 %v577
    %762 = vmatprep.subr.bf16.mxu0 %v572
    %763 = vmatpush2.bf16.msra.mxu0 %v571
    %764 = vmatprep.subr.bf16.mxu0 %v566
    %765 = vmatpush2.bf16.msra.mxu0 %v565
    %766 = vmatprep.subr.bf16.mxu0 %v560
    %767 = vmatpush2.bf16.msra.mxu0 %v559
    %768 = vmatprep.subr.bf16.mxu0 %v554
    %769 = vmatpush2.bf16.msra.mxu0 %v553
    %770 = vmatprep.mubr.bf16.mxu0 %v86
    %771 = vmatmul.mubr.bf16.gmra.mxu0 %v85
    %v772 = vpop.f32.mrf.mxu0
    %v773 = vadd.f32 %v196, %v772
    %v774 = vpop.f32.mrf.mxu0
    %v775 = vadd.f32 %v200, %v774
    %v776 = vpop.f32.mrf.mxu0
    %v777 = vadd.f32 %v196, %v776
    %v778 = vpop.f32.mrf.mxu0
    %v779 = vadd.f32 %v200, %v778
    %780 = vdwg.mxu0
    %781 = vmatprep.subr.bf16.mxu0 %v550
    %782 = vmatpush1.bf16.msra.mxu0 %v549
    %783 = vmatprep.subr.bf16.mxu0 %v544
    %784 = vmatpush1.bf16.msra.mxu0 %v543
    %785 = vmatprep.subr.bf16.mxu0 %v538
    %786 = vmatpush1.bf16.msra.mxu0 %v537
    %787 = vmatprep.subr.bf16.mxu0 %v532
    %788 = vmatpush1.bf16.msra.mxu0 %v531
    %789 = vmatprep.subr.bf16.mxu0 %v526
    %790 = vmatpush1.bf16.msra.mxu0 %v525
    %791 = vmatprep.subr.bf16.mxu0 %v520
    %792 = vmatpush1.bf16.msra.mxu0 %v519
    %793 = vmatprep.subr.bf16.mxu0 %v514
    %794 = vmatpush1.bf16.msra.mxu0 %v513
    %795 = vmatprep.subr.bf16.mxu0 %v508
    %796 = vmatpush1.bf16.msra.mxu0 %v507
    %797 = vmatprep.subr.bf16.mxu0 %v598
    %798 = vmatpush2.bf16.msra.mxu0 %v597
    %799 = vmatprep.subr.bf16.mxu0 %v592
    %800 = vmatpush2.bf16.msra.mxu0 %v591
    %801 = vmatprep.subr.bf16.mxu0 %v586
    %802 = vmatpush2.bf16.msra.mxu0 %v585
    %803 = vmatprep.subr.bf16.mxu0 %v580
    %804 = vmatpush2.bf16.msra.mxu0 %v579
    %805 = vmatprep.subr.bf16.mxu0 %v574
    %806 = vmatpush2.bf16.msra.mxu0 %v573
    %807 = vmatprep.subr.bf16.mxu0 %v568
    %808 = vmatpush2.bf16.msra.mxu0 %v567
    %809 = vmatprep.subr.bf16.mxu0 %v562
    %810 = vmatpush2.bf16.msra.mxu0 %v561
    %811 = vmatprep.subr.bf16.mxu0 %v556
    %812 = vmatpush2.bf16.msra.mxu0 %v555
    %813 = vmatprep.mubr.bf16.mxu0 %v86
    %814 = vmatmul.mubr.bf16.gmra.mxu0 %v85
    %v815 = vpop.f32.mrf.mxu0
    %v816 = vadd.f32 %v204, %v815
    %v817 = vpop.f32.mrf.mxu0
    %v818 = vadd.f32 %v208, %v817
    %v819 = vpop.f32.mrf.mxu0
    %v820 = vadd.f32 %v204, %v819
    %v821 = vpop.f32.mrf.mxu0
    %v822 = vadd.f32 %v208, %v821
    %823 = vdwg.mxu0
    %v824 = vmul.f32 %v730, 0.17677669
    %v825 = vmul.f32 %v732, 0.17677669
    %v826 = vmul.f32 %v734, 0.17677669
    %v827 = vmul.f32 %v736, 0.17677669
    %830 = vrot.lane.b32.xlu0 %v824, 96
    %v831 = vpop.permute.xlu0 %830
    %832 = vrot.lane.b32.xlu0 %v826, 96
    %v833 = vpop.permute.xlu0 %832
    %836 = vrot.lane.b32.xlu0 %v824, 64
    %v837 = vpop.permute.xlu0 %836
    %838 = vrot.lane.b32.xlu0 %v826, 64
    %v839 = vpop.permute.xlu0 %838
    %842 = vrot.lane.b32.xlu0 %v824, 32
    %v843 = vpop.permute.xlu0 %842
    %844 = vrot.lane.b32.xlu0 %v826, 32
    %v845 = vpop.permute.xlu0 %844
    %850 = vrot.lane.b32.xlu0 %v825, 96
    %v851 = vpop.permute.xlu0 %850
    %852 = vrot.lane.b32.xlu0 %v827, 96
    %v853 = vpop.permute.xlu0 %852
    %856 = vrot.lane.b32.xlu0 %v825, 64
    %v857 = vpop.permute.xlu0 %856
    %858 = vrot.lane.b32.xlu0 %v827, 64
    %v859 = vpop.permute.xlu0 %858
    %862 = vrot.lane.b32.xlu0 %v825, 32
    %v863 = vpop.permute.xlu0 %862
    %864 = vrot.lane.b32.xlu0 %v827, 32
    %v865 = vpop.permute.xlu0 %864
    %v868 = vpack.c.bf16 %v824, %v824
    %v869 = vpack.c.bf16 %v826, %v826
    %v870 = vpack.c.bf16 %v831, %v831
    %v871 = vpack.c.bf16 %v833, %v833
    %v872 = vpack.c.bf16 %v837, %v837
    %v873 = vpack.c.bf16 %v839, %v839
    %v874 = vpack.c.bf16 %v843, %v843
    %v875 = vpack.c.bf16 %v845, %v845
    %v876 = vpack.c.bf16 %v825, %v825
    %v877 = vpack.c.bf16 %v827, %v827
    %v878 = vpack.c.bf16 %v851, %v851
    %v879 = vpack.c.bf16 %v853, %v853
    %v880 = vpack.c.bf16 %v857, %v857
    %v881 = vpack.c.bf16 %v859, %v859
    %v882 = vpack.c.bf16 %v863, %v863
    %v883 = vpack.c.bf16 %v865, %v865
    %886 = vrot.lane.b32.xlu0 %v773, 96
    %v887 = vpop.permute.xlu0 %886
    %888 = vrot.lane.b32.xlu0 %v777, 96
    %v889 = vpop.permute.xlu0 %888
    %892 = vrot.lane.b32.xlu0 %v773, 64
    %v893 = vpop.permute.xlu0 %892
    %894 = vrot.lane.b32.xlu0 %v777, 64
    %v895 = vpop.permute.xlu0 %894
    %898 = vrot.lane.b32.xlu0 %v773, 32
    %v899 = vpop.permute.xlu0 %898
    %900 = vrot.lane.b32.xlu0 %v777, 32
    %v901 = vpop.permute.xlu0 %900
    %906 = vrot.lane.b32.xlu0 %v775, 96
    %v907 = vpop.permute.xlu0 %906
    %908 = vrot.lane.b32.xlu0 %v779, 96
    %v909 = vpop.permute.xlu0 %908
    %912 = vrot.lane.b32.xlu0 %v775, 64
    %v913 = vpop.permute.xlu0 %912
    %914 = vrot.lane.b32.xlu0 %v779, 64
    %v915 = vpop.permute.xlu0 %914
    %918 = vrot.lane.b32.xlu0 %v775, 32
    %v919 = vpop.permute.xlu0 %918
    %920 = vrot.lane.b32.xlu0 %v779, 32
    %v921 = vpop.permute.xlu0 %920
    %v924 = vpack.c.bf16 %v773, %v773
    %v925 = vpack.c.bf16 %v777, %v777
    %v926 = vpack.c.bf16 %v887, %v887
    %v927 = vpack.c.bf16 %v889, %v889
    %v928 = vpack.c.bf16 %v893, %v893
    %v929 = vpack.c.bf16 %v895, %v895
    %v930 = vpack.c.bf16 %v899, %v899
    %v931 = vpack.c.bf16 %v901, %v901
    %v932 = vpack.c.bf16 %v775, %v775
    %v933 = vpack.c.bf16 %v779, %v779
    %v934 = vpack.c.bf16 %v907, %v907
    %v935 = vpack.c.bf16 %v909, %v909
    %v936 = vpack.c.bf16 %v913, %v913
    %v937 = vpack.c.bf16 %v915, %v915
    %v938 = vpack.c.bf16 %v919, %v919
    %v939 = vpack.c.bf16 %v921, %v921
    %942 = vrot.lane.b32.xlu0 %v816, 96
    %v943 = vpop.permute.xlu0 %942
    %944 = vrot.lane.b32.xlu0 %v820, 96
    %v945 = vpop.permute.xlu0 %944
    %948 = vrot.lane.b32.xlu0 %v816, 64
    %v949 = vpop.permute.xlu0 %948
    %950 = vrot.lane.b32.xlu0 %v820, 64
    %v951 = vpop.permute.xlu0 %950
    %954 = vrot.lane.b32.xlu0 %v816, 32
    %v955 = vpop.permute.xlu0 %954
    %956 = vrot.lane.b32.xlu0 %v820, 32
    %v957 = vpop.permute.xlu0 %956
    %962 = vrot.lane.b32.xlu0 %v818, 96
    %v963 = vpop.permute.xlu0 %962
    %964 = vrot.lane.b32.xlu0 %v822, 96
    %v965 = vpop.permute.xlu0 %964
    %968 = vrot.lane.b32.xlu0 %v818, 64
    %v969 = vpop.permute.xlu0 %968
    %970 = vrot.lane.b32.xlu0 %v822, 64
    %v971 = vpop.permute.xlu0 %970
    %974 = vrot.lane.b32.xlu0 %v818, 32
    %v975 = vpop.permute.xlu0 %974
    %976 = vrot.lane.b32.xlu0 %v822, 32
    %v977 = vpop.permute.xlu0 %976
    %v980 = vpack.c.bf16 %v816, %v816
    %v981 = vpack.c.bf16 %v820, %v820
    %v982 = vpack.c.bf16 %v943, %v943
    %v983 = vpack.c.bf16 %v945, %v945
    %v984 = vpack.c.bf16 %v949, %v949
    %v985 = vpack.c.bf16 %v951, %v951
    %v986 = vpack.c.bf16 %v955, %v955
    %v987 = vpack.c.bf16 %v957, %v957
    %v988 = vpack.c.bf16 %v818, %v818
    %v989 = vpack.c.bf16 %v822, %v822
    %v990 = vpack.c.bf16 %v963, %v963
    %v991 = vpack.c.bf16 %v965, %v965
    %v992 = vpack.c.bf16 %v969, %v969
    %v993 = vpack.c.bf16 %v971, %v971
    %v994 = vpack.c.bf16 %v975, %v975
    %v995 = vpack.c.bf16 %v977, %v977
    %vm996 = vcmask 261120
    %v998 = vsel %vm996, %v868, 0
    %v1001 = vsel %vm996, %v924, 0
    %1003 = vmatprep.subr.bf16.mxu0 0
    %1004 = vmatpush1.bf16.xpose.msra.mxu0 0
    %1005 = vmatprep.subr.bf16.mxu0 0
    %1006 = vmatpush1.bf16.xpose.msra.mxu0 0
    %1007 = vmatprep.subr.bf16.mxu0 0
    %1008 = vmatpush1.bf16.xpose.msra.mxu0 0
    %1009 = vmatprep.subr.bf16.mxu0 0
    %1010 = vmatpush1.bf16.xpose.msra.mxu0 0
    %1011 = vmatprep.subr.bf16.mxu0 0
    %1012 = vmatpush1.bf16.xpose.msra.mxu0 0
    %1013 = vmatprep.subr.bf16.mxu0 0
    %1014 = vmatpush1.bf16.xpose.msra.mxu0 0
    %1015 = vmatprep.subr.bf16.mxu0 0
    %1016 = vmatpush1.bf16.xpose.msra.mxu0 0
    %1017 = vmatprep.subr.bf16.mxu0 0
    %1018 = vmatpush1.bf16.xpose.msra.mxu0 %v1001
    %1019 = vmatprep.subr.bf16.mxu0 0
    %1020 = vmatpush2.bf16.xpose.msra.mxu0 0
    %1021 = vmatprep.subr.bf16.mxu0 0
    %1022 = vmatpush2.bf16.xpose.msra.mxu0 0
    %1023 = vmatprep.subr.bf16.mxu0 0
    %1024 = vmatpush2.bf16.xpose.msra.mxu0 0
    %1025 = vmatprep.subr.bf16.mxu0 0
    %1026 = vmatpush2.bf16.xpose.msra.mxu0 0
    %1027 = vmatprep.subr.bf16.mxu0 0
    %1028 = vmatpush2.bf16.xpose.msra.mxu0 0
    %1029 = vmatprep.subr.bf16.mxu0 0
    %1030 = vmatpush2.bf16.xpose.msra.mxu0 0
    %1031 = vmatprep.subr.bf16.mxu0 0
    %1032 = vmatpush2.bf16.xpose.msra.mxu0 0
    %1033 = vmatprep.subr.bf16.mxu0 0
    %1034 = vmatpush2.bf16.xpose.msra.mxu0 0
    %1035 = vmatprep.mubr.bf16.mxu0 0
    %1036 = vmatmul.mubr.bf16.gmra.mxu0 %v998
    %v1037 = vpop.f32.mrf.mxu0
    %v1038 = vadd.f32 0.0, %v1037
    %v1039 = vpop.f32.mrf.mxu0
    %v1040 = vpop.f32.mrf.mxu0
    %v1041 = vpop.f32.mrf.mxu0
    %1042 = vdwg.mxu0
    %v1044 = vsel %vm996, %v869, 0
    %v1047 = vsel %vm996, %v925, 0
    %1049 = vmatprep.subr.bf16.mxu0 0
    %1050 = vmatpush1.bf16.xpose.msra.mxu0 0
    %1051 = vmatprep.subr.bf16.mxu0 0
    %1052 = vmatpush1.bf16.xpose.msra.mxu0 0
    %1053 = vmatprep.subr.bf16.mxu0 0
    %1054 = vmatpush1.bf16.xpose.msra.mxu0 0
    %1055 = vmatprep.subr.bf16.mxu0 0
    %1056 = vmatpush1.bf16.xpose.msra.mxu0 0
    %1057 = vmatprep.subr.bf16.mxu0 0
    %1058 = vmatpush1.bf16.xpose.msra.mxu0 0
    %1059 = vmatprep.subr.bf16.mxu0 0
    %1060 = vmatpush1.bf16.xpose.msra.mxu0 0
    %1061 = vmatprep.subr.bf16.mxu0 0
    %1062 = vmatpush1.bf16.xpose.msra.mxu0 0
    %1063 = vmatprep.subr.bf16.mxu0 0
    %1064 = vmatpush1.bf16.xpose.msra.mxu0 %v1047
    %1065 = vmatprep.subr.bf16.mxu0 0
    %1066 = vmatpush2.bf16.xpose.msra.mxu0 0
    %1067 = vmatprep.subr.bf16.mxu0 0
    %1068 = vmatpush2.bf16.xpose.msra.mxu0 0
    %1069 = vmatprep.subr.bf16.mxu0 0
    %1070 = vmatpush2.bf16.xpose.msra.mxu0 0
    %1071 = vmatprep.subr.bf16.mxu0 0
    %1072 = vmatpush2.bf16.xpose.msra.mxu0 0
    %1073 = vmatprep.subr.bf16.mxu0 0
    %1074 = vmatpush2.bf16.xpose.msra.mxu0 0
    %1075 = vmatprep.subr.bf16.mxu0 0
    %1076 = vmatpush2.bf16.xpose.msra.mxu0 0
    %1077 = vmatprep.subr.bf16.mxu0 0
    %1078 = vmatpush2.bf16.xpose.msra.mxu0 0
    %1079 = vmatprep.subr.bf16.mxu0 0
    %1080 = vmatpush2.bf16.xpose.msra.mxu0 0
    %1081 = vmatprep.mubr.bf16.mxu0 0
    %1082 = vmatmul.mubr.bf16.gmra.mxu0 %v1044
    %v1083 = vpop.f32.mrf.mxu0
    %v1084 = vadd.f32 0.0, %v1083
    %v1085 = vpop.f32.mrf.mxu0
    %v1086 = vpop.f32.mrf.mxu0
    %v1087 = vpop.f32.mrf.mxu0
    %1088 = vdwg.mxu0
    %v1090 = vsel %vm996, %v870, 0
    %v1093 = vsel %vm996, %v926, 0
    %1095 = vmatprep.subr.bf16.mxu0 0
    %1096 = vmatpush1.bf16.xpose.msra.mxu0 0
    %1097 = vmatprep.subr.bf16.mxu0 0
    %1098 = vmatpush1.bf16.xpose.msra.mxu0 0
    %1099 = vmatprep.subr.bf16.mxu0 0
    %1100 = vmatpush1.bf16.xpose.msra.mxu0 0
    %1101 = vmatprep.subr.bf16.mxu0 0
    %1102 = vmatpush1.bf16.xpose.msra.mxu0 0
    %1103 = vmatprep.subr.bf16.mxu0 0
    %1104 = vmatpush1.bf16.xpose.msra.mxu0 0
    %1105 = vmatprep.subr.bf16.mxu0 0
    %1106 = vmatpush1.bf16.xpose.msra.mxu0 0
    %1107 = vmatprep.subr.bf16.mxu0 0
    %1108 = vmatpush1.bf16.xpose.msra.mxu0 0
    %1109 = vmatprep.subr.bf16.mxu0 0
    %1110 = vmatpush1.bf16.xpose.msra.mxu0 %v1093
    %1111 = vmatprep.subr.bf16.mxu0 0
    %1112 = vmatpush2.bf16.xpose.msra.mxu0 0
    %1113 = vmatprep.subr.bf16.mxu0 0
    %1114 = vmatpush2.bf16.xpose.msra.mxu0 0
    %1115 = vmatprep.subr.bf16.mxu0 0
    %1116 = vmatpush2.bf16.xpose.msra.mxu0 0
    %1117 = vmatprep.subr.bf16.mxu0 0
    %1118 = vmatpush2.bf16.xpose.msra.mxu0 0
    %1119 = vmatprep.subr.bf16.mxu0 0
    %1120 = vmatpush2.bf16.xpose.msra.mxu0 0
    %1121 = vmatprep.subr.bf16.mxu0 0
    %1122 = vmatpush2.bf16.xpose.msra.mxu0 0
    %1123 = vmatprep.subr.bf16.mxu0 0
    %1124 = vmatpush2.bf16.xpose.msra.mxu0 0
    %1125 = vmatprep.subr.bf16.mxu0 0
    %1126 = vmatpush2.bf16.xpose.msra.mxu0 0
    %1127 = vmatprep.mubr.bf16.mxu0 0
    %1128 = vmatmul.mubr.bf16.gmra.mxu0 %v1090
    %v1129 = vpop.f32.mrf.mxu0
    %v1130 = vadd.f32 0.0, %v1129
    %v1131 = vpop.f32.mrf.mxu0
    %v1132 = vpop.f32.mrf.mxu0
    %v1133 = vpop.f32.mrf.mxu0
    %1134 = vdwg.mxu0
    %v1136 = vsel %vm996, %v871, 0
    %v1139 = vsel %vm996, %v927, 0
    %1141 = vmatprep.subr.bf16.mxu0 0
    %1142 = vmatpush1.bf16.xpose.msra.mxu0 0
    %1143 = vmatprep.subr.bf16.mxu0 0
    %1144 = vmatpush1.bf16.xpose.msra.mxu0 0
    %1145 = vmatprep.subr.bf16.mxu0 0
    %1146 = vmatpush1.bf16.xpose.msra.mxu0 0
    %1147 = vmatprep.subr.bf16.mxu0 0
    %1148 = vmatpush1.bf16.xpose.msra.mxu0 0
    %1149 = vmatprep.subr.bf16.mxu0 0
    %1150 = vmatpush1.bf16.xpose.msra.mxu0 0
    %1151 = vmatprep.subr.bf16.mxu0 0
    %1152 = vmatpush1.bf16.xpose.msra.mxu0 0
    %1153 = vmatprep.subr.bf16.mxu0 0
    %1154 = vmatpush1.bf16.xpose.msra.mxu0 0
    %1155 = vmatprep.subr.bf16.mxu0 0
    %1156 = vmatpush1.bf16.xpose.msra.mxu0 %v1139
    %1157 = vmatprep.subr.bf16.mxu0 0
    %1158 = vmatpush2.bf16.xpose.msra.mxu0 0
    %1159 = vmatprep.subr.bf16.mxu0 0
    %1160 = vmatpush2.bf16.xpose.msra.mxu0 0
    %1161 = vmatprep.subr.bf16.mxu0 0
    %1162 = vmatpush2.bf16.xpose.msra.mxu0 0
    %1163 = vmatprep.subr.bf16.mxu0 0
    %1164 = vmatpush2.bf16.xpose.msra.mxu0 0
    %1165 = vmatprep.subr.bf16.mxu0 0
    %1166 = vmatpush2.bf16.xpose.msra.mxu0 0
    %1167 = vmatprep.subr.bf16.mxu0 0
    %1168 = vmatpush2.bf16.xpose.msra.mxu0 0
    %1169 = vmatprep.subr.bf16.mxu0 0
    %1170 = vmatpush2.bf16.xpose.msra.mxu0 0
    %1171 = vmatprep.subr.bf16.mxu0 0
    %1172 = vmatpush2.bf16.xpose.msra.mxu0 0
    %1173 = vmatprep.mubr.bf16.mxu0 0
    %1174 = vmatmul.mubr.bf16.gmra.mxu0 %v1136
    %v1175 = vpop.f32.mrf.mxu0
    %v1176 = vadd.f32 0.0, %v1175
    %v1177 = vpop.f32.mrf.mxu0
    %v1178 = vpop.f32.mrf.mxu0
    %v1179 = vpop.f32.mrf.mxu0
    %1180 = vdwg.mxu0
    %v1182 = vsel %vm996, %v872, 0
    %v1185 = vsel %vm996, %v928, 0
    %1187 = vmatprep.subr.bf16.mxu0 0
    %1188 = vmatpush1.bf16.xpose.msra.mxu0 0
    %1189 = vmatprep.subr.bf16.mxu0 0
    %1190 = vmatpush1.bf16.xpose.msra.mxu0 0
    %1191 = vmatprep.subr.bf16.mxu0 0
    %1192 = vmatpush1.bf16.xpose.msra.mxu0 0
    %1193 = vmatprep.subr.bf16.mxu0 0
    %1194 = vmatpush1.bf16.xpose.msra.mxu0 0
    %1195 = vmatprep.subr.bf16.mxu0 0
    %1196 = vmatpush1.bf16.xpose.msra.mxu0 0
    %1197 = vmatprep.subr.bf16.mxu0 0
    %1198 = vmatpush1.bf16.xpose.msra.mxu0 0
    %1199 = vmatprep.subr.bf16.mxu0 0
    %1200 = vmatpush1.bf16.xpose.msra.mxu0 0
    %1201 = vmatprep.subr.bf16.mxu0 0
    %1202 = vmatpush1.bf16.xpose.msra.mxu0 %v1185
    %1203 = vmatprep.subr.bf16.mxu0 0
    %1204 = vmatpush2.bf16.xpose.msra.mxu0 0
    %1205 = vmatprep.subr.bf16.mxu0 0
    %1206 = vmatpush2.bf16.xpose.msra.mxu0 0
    %1207 = vmatprep.subr.bf16.mxu0 0
    %1208 = vmatpush2.bf16.xpose.msra.mxu0 0
    %1209 = vmatprep.subr.bf16.mxu0 0
    %1210 = vmatpush2.bf16.xpose.msra.mxu0 0
    %1211 = vmatprep.subr.bf16.mxu0 0
    %1212 = vmatpush2.bf16.xpose.msra.mxu0 0
    %1213 = vmatprep.subr.bf16.mxu0 0
    %1214 = vmatpush2.bf16.xpose.msra.mxu0 0
    %1215 = vmatprep.subr.bf16.mxu0 0
    %1216 = vmatpush2.bf16.xpose.msra.mxu0 0
    %1217 = vmatprep.subr.bf16.mxu0 0
    %1218 = vmatpush2.bf16.xpose.msra.mxu0 0
    %1219 = vmatprep.mubr.bf16.mxu0 0
    %1220 = vmatmul.mubr.bf16.gmra.mxu0 %v1182
    %v1221 = vpop.f32.mrf.mxu0
    %v1222 = vadd.f32 0.0, %v1221
    %v1223 = vpop.f32.mrf.mxu0
    %v1224 = vpop.f32.mrf.mxu0
    %v1225 = vpop.f32.mrf.mxu0
    %1226 = vdwg.mxu0
    %v1228 = vsel %vm996, %v873, 0
    %v1231 = vsel %vm996, %v929, 0
    %1233 = vmatprep.subr.bf16.mxu0 0
    %1234 = vmatpush1.bf16.xpose.msra.mxu0 0
    %1235 = vmatprep.subr.bf16.mxu0 0
    %1236 = vmatpush1.bf16.xpose.msra.mxu0 0
    %1237 = vmatprep.subr.bf16.mxu0 0
    %1238 = vmatpush1.bf16.xpose.msra.mxu0 0
    %1239 = vmatprep.subr.bf16.mxu0 0
    %1240 = vmatpush1.bf16.xpose.msra.mxu0 0
    %1241 = vmatprep.subr.bf16.mxu0 0
    %1242 = vmatpush1.bf16.xpose.msra.mxu0 0
    %1243 = vmatprep.subr.bf16.mxu0 0
    %1244 = vmatpush1.bf16.xpose.msra.mxu0 0
    %1245 = vmatprep.subr.bf16.mxu0 0
    %1246 = vmatpush1.bf16.xpose.msra.mxu0 0
    %1247 = vmatprep.subr.bf16.mxu0 0
    %1248 = vmatpush1.bf16.xpose.msra.mxu0 %v1231
    %1249 = vmatprep.subr.bf16.mxu0 0
    %1250 = vmatpush2.bf16.xpose.msra.mxu0 0
    %1251 = vmatprep.subr.bf16.mxu0 0
    %1252 = vmatpush2.bf16.xpose.msra.mxu0 0
    %1253 = vmatprep.subr.bf16.mxu0 0
    %1254 = vmatpush2.bf16.xpose.msra.mxu0 0
    %1255 = vmatprep.subr.bf16.mxu0 0
    %1256 = vmatpush2.bf16.xpose.msra.mxu0 0
    %1257 = vmatprep.subr.bf16.mxu0 0
    %1258 = vmatpush2.bf16.xpose.msra.mxu0 0
    %1259 = vmatprep.subr.bf16.mxu0 0
    %1260 = vmatpush2.bf16.xpose.msra.mxu0 0
    %1261 = vmatprep.subr.bf16.mxu0 0
    %1262 = vmatpush2.bf16.xpose.msra.mxu0 0
    %1263 = vmatprep.subr.bf16.mxu0 0
    %1264 = vmatpush2.bf16.xpose.msra.mxu0 0
    %1265 = vmatprep.mubr.bf16.mxu0 0
    %1266 = vmatmul.mubr.bf16.gmra.mxu0 %v1228
    %v1267 = vpop.f32.mrf.mxu0
    %v1268 = vadd.f32 0.0, %v1267
    %v1269 = vpop.f32.mrf.mxu0
    %v1270 = vpop.f32.mrf.mxu0
    %v1271 = vpop.f32.mrf.mxu0
    %1272 = vdwg.mxu0
    %v1274 = vsel %vm996, %v874, 0
    %v1277 = vsel %vm996, %v930, 0
    %1279 = vmatprep.subr.bf16.mxu0 0
    %1280 = vmatpush1.bf16.xpose.msra.mxu0 0
    %1281 = vmatprep.subr.bf16.mxu0 0
    %1282 = vmatpush1.bf16.xpose.msra.mxu0 0
    %1283 = vmatprep.subr.bf16.mxu0 0
    %1284 = vmatpush1.bf16.xpose.msra.mxu0 0
    %1285 = vmatprep.subr.bf16.mxu0 0
    %1286 = vmatpush1.bf16.xpose.msra.mxu0 0
    %1287 = vmatprep.subr.bf16.mxu0 0
    %1288 = vmatpush1.bf16.xpose.msra.mxu0 0
    %1289 = vmatprep.subr.bf16.mxu0 0
    %1290 = vmatpush1.bf16.xpose.msra.mxu0 0
    %1291 = vmatprep.subr.bf16.mxu0 0
    %1292 = vmatpush1.bf16.xpose.msra.mxu0 0
    %1293 = vmatprep.subr.bf16.mxu0 0
    %1294 = vmatpush1.bf16.xpose.msra.mxu0 %v1277
    %1295 = vmatprep.subr.bf16.mxu0 0
    %1296 = vmatpush2.bf16.xpose.msra.mxu0 0
    %1297 = vmatprep.subr.bf16.mxu0 0
    %1298 = vmatpush2.bf16.xpose.msra.mxu0 0
    %1299 = vmatprep.subr.bf16.mxu0 0
    %1300 = vmatpush2.bf16.xpose.msra.mxu0 0
    %1301 = vmatprep.subr.bf16.mxu0 0
    %1302 = vmatpush2.bf16.xpose.msra.mxu0 0
    %1303 = vmatprep.subr.bf16.mxu0 0
    %1304 = vmatpush2.bf16.xpose.msra.mxu0 0
    %1305 = vmatprep.subr.bf16.mxu0 0
    %1306 = vmatpush2.bf16.xpose.msra.mxu0 0
    %1307 = vmatprep.subr.bf16.mxu0 0
    %1308 = vmatpush2.bf16.xpose.msra.mxu0 0
    %1309 = vmatprep.subr.bf16.mxu0 0
    %1310 = vmatpush2.bf16.xpose.msra.mxu0 0
    %1311 = vmatprep.mubr.bf16.mxu0 0
    %1312 = vmatmul.mubr.bf16.gmra.mxu0 %v1274
    %v1313 = vpop.f32.mrf.mxu0
    %v1314 = vadd.f32 0.0, %v1313
    %v1315 = vpop.f32.mrf.mxu0
    %v1316 = vpop.f32.mrf.mxu0
    %v1317 = vpop.f32.mrf.mxu0
    %1318 = vdwg.mxu0
    %v1320 = vsel %vm996, %v875, 0
    %v1323 = vsel %vm996, %v931, 0
    %1325 = vmatprep.subr.bf16.mxu0 0
    %1326 = vmatpush1.bf16.xpose.msra.mxu0 0
    %1327 = vmatprep.subr.bf16.mxu0 0
    %1328 = vmatpush1.bf16.xpose.msra.mxu0 0
    %1329 = vmatprep.subr.bf16.mxu0 0
    %1330 = vmatpush1.bf16.xpose.msra.mxu0 0
    %1331 = vmatprep.subr.bf16.mxu0 0
    %1332 = vmatpush1.bf16.xpose.msra.mxu0 0
    %1333 = vmatprep.subr.bf16.mxu0 0
    %1334 = vmatpush1.bf16.xpose.msra.mxu0 0
    %1335 = vmatprep.subr.bf16.mxu0 0
    %1336 = vmatpush1.bf16.xpose.msra.mxu0 0
    %1337 = vmatprep.subr.bf16.mxu0 0
    %1338 = vmatpush1.bf16.xpose.msra.mxu0 0
    %1339 = vmatprep.subr.bf16.mxu0 0
    %1340 = vmatpush1.bf16.xpose.msra.mxu0 %v1323
    %1341 = vmatprep.subr.bf16.mxu0 0
    %1342 = vmatpush2.bf16.xpose.msra.mxu0 0
    %1343 = vmatprep.subr.bf16.mxu0 0
    %1344 = vmatpush2.bf16.xpose.msra.mxu0 0
    %1345 = vmatprep.subr.bf16.mxu0 0
    %1346 = vmatpush2.bf16.xpose.msra.mxu0 0
    %1347 = vmatprep.subr.bf16.mxu0 0
    %1348 = vmatpush2.bf16.xpose.msra.mxu0 0
    %1349 = vmatprep.subr.bf16.mxu0 0
    %1350 = vmatpush2.bf16.xpose.msra.mxu0 0
    %1351 = vmatprep.subr.bf16.mxu0 0
    %1352 = vmatpush2.bf16.xpose.msra.mxu0 0
    %1353 = vmatprep.subr.bf16.mxu0 0
    %1354 = vmatpush2.bf16.xpose.msra.mxu0 0
    %1355 = vmatprep.subr.bf16.mxu0 0
    %1356 = vmatpush2.bf16.xpose.msra.mxu0 0
    %1357 = vmatprep.mubr.bf16.mxu0 0
    %1358 = vmatmul.mubr.bf16.gmra.mxu0 %v1320
    %v1359 = vpop.f32.mrf.mxu0
    %v1360 = vadd.f32 0.0, %v1359
    %v1361 = vpop.f32.mrf.mxu0
    %v1362 = vpop.f32.mrf.mxu0
    %v1363 = vpop.f32.mrf.mxu0
    %1364 = vdwg.mxu0
    %v1366 = vsel %vm996, %v876, 0
    %v1369 = vsel %vm996, %v932, 0
    %1371 = vmatprep.subr.bf16.mxu0 0
    %1372 = vmatpush1.bf16.xpose.msra.mxu0 0
    %1373 = vmatprep.subr.bf16.mxu0 0
    %1374 = vmatpush1.bf16.xpose.msra.mxu0 0
    %1375 = vmatprep.subr.bf16.mxu0 0
    %1376 = vmatpush1.bf16.xpose.msra.mxu0 0
    %1377 = vmatprep.subr.bf16.mxu0 0
    %1378 = vmatpush1.bf16.xpose.msra.mxu0 0
    %1379 = vmatprep.subr.bf16.mxu0 0
    %1380 = vmatpush1.bf16.xpose.msra.mxu0 0
    %1381 = vmatprep.subr.bf16.mxu0 0
    %1382 = vmatpush1.bf16.xpose.msra.mxu0 0
    %1383 = vmatprep.subr.bf16.mxu0 0
    %1384 = vmatpush1.bf16.xpose.msra.mxu0 0
    %1385 = vmatprep.subr.bf16.mxu0 0
    %1386 = vmatpush1.bf16.xpose.msra.mxu0 %v1369
    %1387 = vmatprep.subr.bf16.mxu0 0
    %1388 = vmatpush2.bf16.xpose.msra.mxu0 0
    %1389 = vmatprep.subr.bf16.mxu0 0
    %1390 = vmatpush2.bf16.xpose.msra.mxu0 0
    %1391 = vmatprep.subr.bf16.mxu0 0
    %1392 = vmatpush2.bf16.xpose.msra.mxu0 0
    %1393 = vmatprep.subr.bf16.mxu0 0
    %1394 = vmatpush2.bf16.xpose.msra.mxu0 0
    %1395 = vmatprep.subr.bf16.mxu0 0
    %1396 = vmatpush2.bf16.xpose.msra.mxu0 0
    %1397 = vmatprep.subr.bf16.mxu0 0
    %1398 = vmatpush2.bf16.xpose.msra.mxu0 0
    %1399 = vmatprep.subr.bf16.mxu0 0
    %1400 = vmatpush2.bf16.xpose.msra.mxu0 0
    %1401 = vmatprep.subr.bf16.mxu0 0
    %1402 = vmatpush2.bf16.xpose.msra.mxu0 0
    %1403 = vmatprep.mubr.bf16.mxu0 0
    %1404 = vmatmul.mubr.bf16.gmra.mxu0 %v1366
    %v1405 = vpop.f32.mrf.mxu0
    %v1406 = vadd.f32 0.0, %v1405
    %v1407 = vpop.f32.mrf.mxu0
    %v1408 = vpop.f32.mrf.mxu0
    %v1409 = vpop.f32.mrf.mxu0
    %1410 = vdwg.mxu0
    %v1412 = vsel %vm996, %v877, 0
    %v1415 = vsel %vm996, %v933, 0
    %1417 = vmatprep.subr.bf16.mxu0 0
    %1418 = vmatpush1.bf16.xpose.msra.mxu0 0
    %1419 = vmatprep.subr.bf16.mxu0 0
    %1420 = vmatpush1.bf16.xpose.msra.mxu0 0
    %1421 = vmatprep.subr.bf16.mxu0 0
    %1422 = vmatpush1.bf16.xpose.msra.mxu0 0
    %1423 = vmatprep.subr.bf16.mxu0 0
    %1424 = vmatpush1.bf16.xpose.msra.mxu0 0
    %1425 = vmatprep.subr.bf16.mxu0 0
    %1426 = vmatpush1.bf16.xpose.msra.mxu0 0
    %1427 = vmatprep.subr.bf16.mxu0 0
    %1428 = vmatpush1.bf16.xpose.msra.mxu0 0
    %1429 = vmatprep.subr.bf16.mxu0 0
    %1430 = vmatpush1.bf16.xpose.msra.mxu0 0
    %1431 = vmatprep.subr.bf16.mxu0 0
    %1432 = vmatpush1.bf16.xpose.msra.mxu0 %v1415
    %1433 = vmatprep.subr.bf16.mxu0 0
    %1434 = vmatpush2.bf16.xpose.msra.mxu0 0
    %1435 = vmatprep.subr.bf16.mxu0 0
    %1436 = vmatpush2.bf16.xpose.msra.mxu0 0
    %1437 = vmatprep.subr.bf16.mxu0 0
    %1438 = vmatpush2.bf16.xpose.msra.mxu0 0
    %1439 = vmatprep.subr.bf16.mxu0 0
    %1440 = vmatpush2.bf16.xpose.msra.mxu0 0
    %1441 = vmatprep.subr.bf16.mxu0 0
    %1442 = vmatpush2.bf16.xpose.msra.mxu0 0
    %1443 = vmatprep.subr.bf16.mxu0 0
    %1444 = vmatpush2.bf16.xpose.msra.mxu0 0
    %1445 = vmatprep.subr.bf16.mxu0 0
    %1446 = vmatpush2.bf16.xpose.msra.mxu0 0
    %1447 = vmatprep.subr.bf16.mxu0 0
    %1448 = vmatpush2.bf16.xpose.msra.mxu0 0
    %1449 = vmatprep.mubr.bf16.mxu0 0
    %1450 = vmatmul.mubr.bf16.gmra.mxu0 %v1412
    %v1451 = vpop.f32.mrf.mxu0
    %v1452 = vadd.f32 0.0, %v1451
    %v1453 = vpop.f32.mrf.mxu0
    %v1454 = vpop.f32.mrf.mxu0
    %v1455 = vpop.f32.mrf.mxu0
    %1456 = vdwg.mxu0
    %v1458 = vsel %vm996, %v878, 0
    %v1461 = vsel %vm996, %v934, 0
    %1463 = vmatprep.subr.bf16.mxu0 0
    %1464 = vmatpush1.bf16.xpose.msra.mxu0 0
    %1465 = vmatprep.subr.bf16.mxu0 0
    %1466 = vmatpush1.bf16.xpose.msra.mxu0 0
    %1467 = vmatprep.subr.bf16.mxu0 0
    %1468 = vmatpush1.bf16.xpose.msra.mxu0 0
    %1469 = vmatprep.subr.bf16.mxu0 0
    %1470 = vmatpush1.bf16.xpose.msra.mxu0 0
    %1471 = vmatprep.subr.bf16.mxu0 0
    %1472 = vmatpush1.bf16.xpose.msra.mxu0 0
    %1473 = vmatprep.subr.bf16.mxu0 0
    %1474 = vmatpush1.bf16.xpose.msra.mxu0 0
    %1475 = vmatprep.subr.bf16.mxu0 0
    %1476 = vmatpush1.bf16.xpose.msra.mxu0 0
    %1477 = vmatprep.subr.bf16.mxu0 0
    %1478 = vmatpush1.bf16.xpose.msra.mxu0 %v1461
    %1479 = vmatprep.subr.bf16.mxu0 0
    %1480 = vmatpush2.bf16.xpose.msra.mxu0 0
    %1481 = vmatprep.subr.bf16.mxu0 0
    %1482 = vmatpush2.bf16.xpose.msra.mxu0 0
    %1483 = vmatprep.subr.bf16.mxu0 0
    %1484 = vmatpush2.bf16.xpose.msra.mxu0 0
    %1485 = vmatprep.subr.bf16.mxu0 0
    %1486 = vmatpush2.bf16.xpose.msra.mxu0 0
    %1487 = vmatprep.subr.bf16.mxu0 0
    %1488 = vmatpush2.bf16.xpose.msra.mxu0 0
    %1489 = vmatprep.subr.bf16.mxu0 0
    %1490 = vmatpush2.bf16.xpose.msra.mxu0 0
    %1491 = vmatprep.subr.bf16.mxu0 0
    %1492 = vmatpush2.bf16.xpose.msra.mxu0 0
    %1493 = vmatprep.subr.bf16.mxu0 0
    %1494 = vmatpush2.bf16.xpose.msra.mxu0 0
    %1495 = vmatprep.mubr.bf16.mxu0 0
    %1496 = vmatmul.mubr.bf16.gmra.mxu0 %v1458
    %v1497 = vpop.f32.mrf.mxu0
    %v1498 = vadd.f32 0.0, %v1497
    %v1499 = vpop.f32.mrf.mxu0
    %v1500 = vpop.f32.mrf.mxu0
    %v1501 = vpop.f32.mrf.mxu0
    %1502 = vdwg.mxu0
    %v1504 = vsel %vm996, %v879, 0
    %v1507 = vsel %vm996, %v935, 0
    %1509 = vmatprep.subr.bf16.mxu0 0
    %1510 = vmatpush1.bf16.xpose.msra.mxu0 0
    %1511 = vmatprep.subr.bf16.mxu0 0
    %1512 = vmatpush1.bf16.xpose.msra.mxu0 0
    %1513 = vmatprep.subr.bf16.mxu0 0
    %1514 = vmatpush1.bf16.xpose.msra.mxu0 0
    %1515 = vmatprep.subr.bf16.mxu0 0
    %1516 = vmatpush1.bf16.xpose.msra.mxu0 0
    %1517 = vmatprep.subr.bf16.mxu0 0
    %1518 = vmatpush1.bf16.xpose.msra.mxu0 0
    %1519 = vmatprep.subr.bf16.mxu0 0
    %1520 = vmatpush1.bf16.xpose.msra.mxu0 0
    %1521 = vmatprep.subr.bf16.mxu0 0
    %1522 = vmatpush1.bf16.xpose.msra.mxu0 0
    %1523 = vmatprep.subr.bf16.mxu0 0
    %1524 = vmatpush1.bf16.xpose.msra.mxu0 %v1507
    %1525 = vmatprep.subr.bf16.mxu0 0
    %1526 = vmatpush2.bf16.xpose.msra.mxu0 0
    %1527 = vmatprep.subr.bf16.mxu0 0
    %1528 = vmatpush2.bf16.xpose.msra.mxu0 0
    %1529 = vmatprep.subr.bf16.mxu0 0
    %1530 = vmatpush2.bf16.xpose.msra.mxu0 0
    %1531 = vmatprep.subr.bf16.mxu0 0
    %1532 = vmatpush2.bf16.xpose.msra.mxu0 0
    %1533 = vmatprep.subr.bf16.mxu0 0
    %1534 = vmatpush2.bf16.xpose.msra.mxu0 0
    %1535 = vmatprep.subr.bf16.mxu0 0
    %1536 = vmatpush2.bf16.xpose.msra.mxu0 0
    %1537 = vmatprep.subr.bf16.mxu0 0
    %1538 = vmatpush2.bf16.xpose.msra.mxu0 0
    %1539 = vmatprep.subr.bf16.mxu0 0
    %1540 = vmatpush2.bf16.xpose.msra.mxu0 0
    %1541 = vmatprep.mubr.bf16.mxu0 0
    %1542 = vmatmul.mubr.bf16.gmra.mxu0 %v1504
    %v1543 = vpop.f32.mrf.mxu0
    %v1544 = vadd.f32 0.0, %v1543
    %v1545 = vpop.f32.mrf.mxu0
    %v1546 = vpop.f32.mrf.mxu0
    %v1547 = vpop.f32.mrf.mxu0
    %1548 = vdwg.mxu0
    %v1550 = vsel %vm996, %v880, 0
    %v1553 = vsel %vm996, %v936, 0
    %1555 = vmatprep.subr.bf16.mxu0 0
    %1556 = vmatpush1.bf16.xpose.msra.mxu0 0
    %1557 = vmatprep.subr.bf16.mxu0 0
    %1558 = vmatpush1.bf16.xpose.msra.mxu0 0
    %1559 = vmatprep.subr.bf16.mxu0 0
    %1560 = vmatpush1.bf16.xpose.msra.mxu0 0
    %1561 = vmatprep.subr.bf16.mxu0 0
    %1562 = vmatpush1.bf16.xpose.msra.mxu0 0
    %1563 = vmatprep.subr.bf16.mxu0 0
    %1564 = vmatpush1.bf16.xpose.msra.mxu0 0
    %1565 = vmatprep.subr.bf16.mxu0 0
    %1566 = vmatpush1.bf16.xpose.msra.mxu0 0
    %1567 = vmatprep.subr.bf16.mxu0 0
    %1568 = vmatpush1.bf16.xpose.msra.mxu0 0
    %1569 = vmatprep.subr.bf16.mxu0 0
    %1570 = vmatpush1.bf16.xpose.msra.mxu0 %v1553
    %1571 = vmatprep.subr.bf16.mxu0 0
    %1572 = vmatpush2.bf16.xpose.msra.mxu0 0
    %1573 = vmatprep.subr.bf16.mxu0 0
    %1574 = vmatpush2.bf16.xpose.msra.mxu0 0
    %1575 = vmatprep.subr.bf16.mxu0 0
    %1576 = vmatpush2.bf16.xpose.msra.mxu0 0
    %1577 = vmatprep.subr.bf16.mxu0 0
    %1578 = vmatpush2.bf16.xpose.msra.mxu0 0
    %1579 = vmatprep.subr.bf16.mxu0 0
    %1580 = vmatpush2.bf16.xpose.msra.mxu0 0
    %1581 = vmatprep.subr.bf16.mxu0 0
    %1582 = vmatpush2.bf16.xpose.msra.mxu0 0
    %1583 = vmatprep.subr.bf16.mxu0 0
    %1584 = vmatpush2.bf16.xpose.msra.mxu0 0
    %1585 = vmatprep.subr.bf16.mxu0 0
    %1586 = vmatpush2.bf16.xpose.msra.mxu0 0
    %1587 = vmatprep.mubr.bf16.mxu0 0
    %1588 = vmatmul.mubr.bf16.gmra.mxu0 %v1550
    %v1589 = vpop.f32.mrf.mxu0
    %v1590 = vadd.f32 0.0, %v1589
    %v1591 = vpop.f32.mrf.mxu0
    %v1592 = vpop.f32.mrf.mxu0
    %v1593 = vpop.f32.mrf.mxu0
    %1594 = vdwg.mxu0
    %v1596 = vsel %vm996, %v881, 0
    %v1599 = vsel %vm996, %v937, 0
    %1601 = vmatprep.subr.bf16.mxu0 0
    %1602 = vmatpush1.bf16.xpose.msra.mxu0 0
    %1603 = vmatprep.subr.bf16.mxu0 0
    %1604 = vmatpush1.bf16.xpose.msra.mxu0 0
    %1605 = vmatprep.subr.bf16.mxu0 0
    %1606 = vmatpush1.bf16.xpose.msra.mxu0 0
    %1607 = vmatprep.subr.bf16.mxu0 0
    %1608 = vmatpush1.bf16.xpose.msra.mxu0 0
    %1609 = vmatprep.subr.bf16.mxu0 0
    %1610 = vmatpush1.bf16.xpose.msra.mxu0 0
    %1611 = vmatprep.subr.bf16.mxu0 0
    %1612 = vmatpush1.bf16.xpose.msra.mxu0 0
    %1613 = vmatprep.subr.bf16.mxu0 0
    %1614 = vmatpush1.bf16.xpose.msra.mxu0 0
    %1615 = vmatprep.subr.bf16.mxu0 0
    %1616 = vmatpush1.bf16.xpose.msra.mxu0 %v1599
    %1617 = vmatprep.subr.bf16.mxu0 0
    %1618 = vmatpush2.bf16.xpose.msra.mxu0 0
    %1619 = vmatprep.subr.bf16.mxu0 0
    %1620 = vmatpush2.bf16.xpose.msra.mxu0 0
    %1621 = vmatprep.subr.bf16.mxu0 0
    %1622 = vmatpush2.bf16.xpose.msra.mxu0 0
    %1623 = vmatprep.subr.bf16.mxu0 0
    %1624 = vmatpush2.bf16.xpose.msra.mxu0 0
    %1625 = vmatprep.subr.bf16.mxu0 0
    %1626 = vmatpush2.bf16.xpose.msra.mxu0 0
    %1627 = vmatprep.subr.bf16.mxu0 0
    %1628 = vmatpush2.bf16.xpose.msra.mxu0 0
    %1629 = vmatprep.subr.bf16.mxu0 0
    %1630 = vmatpush2.bf16.xpose.msra.mxu0 0
    %1631 = vmatprep.subr.bf16.mxu0 0
    %1632 = vmatpush2.bf16.xpose.msra.mxu0 0
    %1633 = vmatprep.mubr.bf16.mxu0 0
    %1634 = vmatmul.mubr.bf16.gmra.mxu0 %v1596
    %v1635 = vpop.f32.mrf.mxu0
    %v1636 = vadd.f32 0.0, %v1635
    %v1637 = vpop.f32.mrf.mxu0
    %v1638 = vpop.f32.mrf.mxu0
    %v1639 = vpop.f32.mrf.mxu0
    %1640 = vdwg.mxu0
    %v1642 = vsel %vm996, %v882, 0
    %v1645 = vsel %vm996, %v938, 0
    %1647 = vmatprep.subr.bf16.mxu0 0
    %1648 = vmatpush1.bf16.xpose.msra.mxu0 0
    %1649 = vmatprep.subr.bf16.mxu0 0
    %1650 = vmatpush1.bf16.xpose.msra.mxu0 0
    %1651 = vmatprep.subr.bf16.mxu0 0
    %1652 = vmatpush1.bf16.xpose.msra.mxu0 0
    %1653 = vmatprep.subr.bf16.mxu0 0
    %1654 = vmatpush1.bf16.xpose.msra.mxu0 0
    %1655 = vmatprep.subr.bf16.mxu0 0
    %1656 = vmatpush1.bf16.xpose.msra.mxu0 0
    %1657 = vmatprep.subr.bf16.mxu0 0
    %1658 = vmatpush1.bf16.xpose.msra.mxu0 0
    %1659 = vmatprep.subr.bf16.mxu0 0
    %1660 = vmatpush1.bf16.xpose.msra.mxu0 0
    %1661 = vmatprep.subr.bf16.mxu0 0
    %1662 = vmatpush1.bf16.xpose.msra.mxu0 %v1645
    %1663 = vmatprep.subr.bf16.mxu0 0
    %1664 = vmatpush2.bf16.xpose.msra.mxu0 0
    %1665 = vmatprep.subr.bf16.mxu0 0
    %1666 = vmatpush2.bf16.xpose.msra.mxu0 0
    %1667 = vmatprep.subr.bf16.mxu0 0
    %1668 = vmatpush2.bf16.xpose.msra.mxu0 0
    %1669 = vmatprep.subr.bf16.mxu0 0
    %1670 = vmatpush2.bf16.xpose.msra.mxu0 0
    %1671 = vmatprep.subr.bf16.mxu0 0
    %1672 = vmatpush2.bf16.xpose.msra.mxu0 0
    %1673 = vmatprep.subr.bf16.mxu0 0
    %1674 = vmatpush2.bf16.xpose.msra.mxu0 0
    %1675 = vmatprep.subr.bf16.mxu0 0
    %1676 = vmatpush2.bf16.xpose.msra.mxu0 0
    %1677 = vmatprep.subr.bf16.mxu0 0
    %1678 = vmatpush2.bf16.xpose.msra.mxu0 0
    %1679 = vmatprep.mubr.bf16.mxu0 0
    %1680 = vmatmul.mubr.bf16.gmra.mxu0 %v1642
    %v1681 = vpop.f32.mrf.mxu0
    %v1682 = vadd.f32 0.0, %v1681
    %v1683 = vpop.f32.mrf.mxu0
    %v1684 = vpop.f32.mrf.mxu0
    %v1685 = vpop.f32.mrf.mxu0
    %1686 = vdwg.mxu0
    %v1688 = vsel %vm996, %v883, 0
    %v1691 = vsel %vm996, %v939, 0
    %1693 = vmatprep.subr.bf16.mxu0 0
    %1694 = vmatpush1.bf16.xpose.msra.mxu0 0
    %1695 = vmatprep.subr.bf16.mxu0 0
    %1696 = vmatpush1.bf16.xpose.msra.mxu0 0
    %1697 = vmatprep.subr.bf16.mxu0 0
    %1698 = vmatpush1.bf16.xpose.msra.mxu0 0
    %1699 = vmatprep.subr.bf16.mxu0 0
    %1700 = vmatpush1.bf16.xpose.msra.mxu0 0
    %1701 = vmatprep.subr.bf16.mxu0 0
    %1702 = vmatpush1.bf16.xpose.msra.mxu0 0
    %1703 = vmatprep.subr.bf16.mxu0 0
    %1704 = vmatpush1.bf16.xpose.msra.mxu0 0
    %1705 = vmatprep.subr.bf16.mxu0 0
    %1706 = vmatpush1.bf16.xpose.msra.mxu0 0
    %1707 = vmatprep.subr.bf16.mxu0 0
    %1708 = vmatpush1.bf16.xpose.msra.mxu0 %v1691
    %1709 = vmatprep.subr.bf16.mxu0 0
    %1710 = vmatpush2.bf16.xpose.msra.mxu0 0
    %1711 = vmatprep.subr.bf16.mxu0 0
    %1712 = vmatpush2.bf16.xpose.msra.mxu0 0
    %1713 = vmatprep.subr.bf16.mxu0 0
    %1714 = vmatpush2.bf16.xpose.msra.mxu0 0
    %1715 = vmatprep.subr.bf16.mxu0 0
    %1716 = vmatpush2.bf16.xpose.msra.mxu0 0
    %1717 = vmatprep.subr.bf16.mxu0 0
    %1718 = vmatpush2.bf16.xpose.msra.mxu0 0
    %1719 = vmatprep.subr.bf16.mxu0 0
    %1720 = vmatpush2.bf16.xpose.msra.mxu0 0
    %1721 = vmatprep.subr.bf16.mxu0 0
    %1722 = vmatpush2.bf16.xpose.msra.mxu0 0
    %1723 = vmatprep.subr.bf16.mxu0 0
    %1724 = vmatpush2.bf16.xpose.msra.mxu0 0
    %1725 = vmatprep.mubr.bf16.mxu0 0
    %1726 = vmatmul.mubr.bf16.gmra.mxu0 %v1688
    %v1727 = vpop.f32.mrf.mxu0
    %v1728 = vadd.f32 0.0, %v1727
    %v1729 = vpop.f32.mrf.mxu0
    %v1730 = vpop.f32.mrf.mxu0
    %v1731 = vpop.f32.mrf.mxu0
    %1732 = vdwg.mxu0
    %vm1733 = vcmask 64512
    %v1734 = vsel %vm1733, %v1038, -inf
    %1735 = vmax.xlane.f32.xlu0 %v1734
    %v1736 = vpop.xlane.xlu0 %1735
    %v1737 = vsel %vm1733, %v1084, -inf
    %1738 = vmax.xlane.f32.xlu0 %v1737
    %v1739 = vpop.xlane.xlu0 %1738
    %v1740 = vsel %vm1733, %v1130, -inf
    %1741 = vmax.xlane.f32.xlu0 %v1740
    %v1742 = vpop.xlane.xlu0 %1741
    %v1743 = vsel %vm1733, %v1176, -inf
    %1744 = vmax.xlane.f32.xlu0 %v1743
    %v1745 = vpop.xlane.xlu0 %1744
    %v1746 = vsel %vm1733, %v1222, -inf
    %1747 = vmax.xlane.f32.xlu0 %v1746
    %v1748 = vpop.xlane.xlu0 %1747
    %v1749 = vsel %vm1733, %v1268, -inf
    %1750 = vmax.xlane.f32.xlu0 %v1749
    %v1751 = vpop.xlane.xlu0 %1750
    %v1752 = vsel %vm1733, %v1314, -inf
    %1753 = vmax.xlane.f32.xlu0 %v1752
    %v1754 = vpop.xlane.xlu0 %1753
    %v1755 = vsel %vm1733, %v1360, -inf
    %1756 = vmax.xlane.f32.xlu0 %v1755
    %v1757 = vpop.xlane.xlu0 %1756
    %v1758 = vsel %vm1733, %v1406, -inf
    %1759 = vmax.xlane.f32.xlu0 %v1758
    %v1760 = vpop.xlane.xlu0 %1759
    %v1761 = vsel %vm1733, %v1452, -inf
    %1762 = vmax.xlane.f32.xlu0 %v1761
    %v1763 = vpop.xlane.xlu0 %1762
    %v1764 = vsel %vm1733, %v1498, -inf
    %1765 = vmax.xlane.f32.xlu0 %v1764
    %v1766 = vpop.xlane.xlu0 %1765
    %v1767 = vsel %vm1733, %v1544, -inf
    %1768 = vmax.xlane.f32.xlu0 %v1767
    %v1769 = vpop.xlane.xlu0 %1768
    %v1770 = vsel %vm1733, %v1590, -inf
    %1771 = vmax.xlane.f32.xlu0 %v1770
    %v1772 = vpop.xlane.xlu0 %1771
    %v1773 = vsel %vm1733, %v1636, -inf
    %1774 = vmax.xlane.f32.xlu0 %v1773
    %v1775 = vpop.xlane.xlu0 %1774
    %v1776 = vsel %vm1733, %v1682, -inf
    %1777 = vmax.xlane.f32.xlu0 %v1776
    %v1778 = vpop.xlane.xlu0 %1777
    %v1779 = vsel %vm1733, %v1728, -inf
    %1780 = vmax.xlane.f32.xlu0 %v1779
    %v1781 = vpop.xlane.xlu0 %1780
    %v1782 = vsub.f32 %v1038, %v1736
    %v1783 = vsub.f32 %v1084, %v1739
    %v1784 = vsub.f32 %v1130, %v1742
    %v1785 = vsub.f32 %v1176, %v1745
    %v1786 = vsub.f32 %v1222, %v1748
    %v1787 = vsub.f32 %v1268, %v1751
    %v1788 = vsub.f32 %v1314, %v1754
    %v1789 = vsub.f32 %v1360, %v1757
    %v1790 = vsub.f32 %v1406, %v1760
    %v1791 = vsub.f32 %v1452, %v1763
    %v1792 = vsub.f32 %v1498, %v1766
    %v1793 = vsub.f32 %v1544, %v1769
    %v1794 = vsub.f32 %v1590, %v1772
    %v1795 = vsub.f32 %v1636, %v1775
    %v1796 = vsub.f32 %v1682, %v1778
    %v1797 = vsub.f32 %v1728, %v1781
    %v1798 = vmul.f32 %v1782, 1.442695
    %v1799 = vpow.pop %v1798
    %v1800 = vmul.f32 %v1783, 1.442695
    %v1801 = vpow.pop %v1800
    %v1802 = vmul.f32 %v1784, 1.442695
    %v1803 = vpow.pop %v1802
    %v1804 = vmul.f32 %v1785, 1.442695
    %v1805 = vpow.pop %v1804
    %v1806 = vmul.f32 %v1786, 1.442695
    %v1807 = vpow.pop %v1806
    %v1808 = vmul.f32 %v1787, 1.442695
    %v1809 = vpow.pop %v1808
    %v1810 = vmul.f32 %v1788, 1.442695
    %v1811 = vpow.pop %v1810
    %v1812 = vmul.f32 %v1789, 1.442695
    %v1813 = vpow.pop %v1812
    %v1814 = vmul.f32 %v1790, 1.442695
    %v1815 = vpow.pop %v1814
    %v1816 = vmul.f32 %v1791, 1.442695
    %v1817 = vpow.pop %v1816
    %v1818 = vmul.f32 %v1792, 1.442695
    %v1819 = vpow.pop %v1818
    %v1820 = vmul.f32 %v1793, 1.442695
    %v1821 = vpow.pop %v1820
    %v1822 = vmul.f32 %v1794, 1.442695
    %v1823 = vpow.pop %v1822
    %v1824 = vmul.f32 %v1795, 1.442695
    %v1825 = vpow.pop %v1824
    %v1826 = vmul.f32 %v1796, 1.442695
    %v1827 = vpow.pop %v1826
    %v1828 = vmul.f32 %v1797, 1.442695
    %v1829 = vpow.pop %v1828
    %v1830 = vsel %vm1733, %v1799, 0.0
    %1831 = vadd.xlane.f32.xlu0 %v1830
    %v1832 = vpop.xlane.xlu0 %1831
    %v1833 = vsel %vm1733, %v1801, 0.0
    %1834 = vadd.xlane.f32.xlu0 %v1833
    %v1835 = vpop.xlane.xlu0 %1834
    %v1836 = vsel %vm1733, %v1803, 0.0
    %1837 = vadd.xlane.f32.xlu0 %v1836
    %v1838 = vpop.xlane.xlu0 %1837
    %v1839 = vsel %vm1733, %v1805, 0.0
    %1840 = vadd.xlane.f32.xlu0 %v1839
    %v1841 = vpop.xlane.xlu0 %1840
    %v1842 = vsel %vm1733, %v1807, 0.0
    %1843 = vadd.xlane.f32.xlu0 %v1842
    %v1844 = vpop.xlane.xlu0 %1843
    %v1845 = vsel %vm1733, %v1809, 0.0
    %1846 = vadd.xlane.f32.xlu0 %v1845
    %v1847 = vpop.xlane.xlu0 %1846
    %v1848 = vsel %vm1733, %v1811, 0.0
    %1849 = vadd.xlane.f32.xlu0 %v1848
    %v1850 = vpop.xlane.xlu0 %1849
    %v1851 = vsel %vm1733, %v1813, 0.0
    %1852 = vadd.xlane.f32.xlu0 %v1851
    %v1853 = vpop.xlane.xlu0 %1852
    %v1854 = vsel %vm1733, %v1815, 0.0
    %1855 = vadd.xlane.f32.xlu0 %v1854
    %v1856 = vpop.xlane.xlu0 %1855
    %v1857 = vsel %vm1733, %v1817, 0.0
    %1858 = vadd.xlane.f32.xlu0 %v1857
    %v1859 = vpop.xlane.xlu0 %1858
    %v1860 = vsel %vm1733, %v1819, 0.0
    %1861 = vadd.xlane.f32.xlu0 %v1860
    %v1862 = vpop.xlane.xlu0 %1861
    %v1863 = vsel %vm1733, %v1821, 0.0
    %1864 = vadd.xlane.f32.xlu0 %v1863
    %v1865 = vpop.xlane.xlu0 %1864
    %v1866 = vsel %vm1733, %v1823, 0.0
    %1867 = vadd.xlane.f32.xlu0 %v1866
    %v1868 = vpop.xlane.xlu0 %1867
    %v1869 = vsel %vm1733, %v1825, 0.0
    %1870 = vadd.xlane.f32.xlu0 %v1869
    %v1871 = vpop.xlane.xlu0 %1870
    %v1872 = vsel %vm1733, %v1827, 0.0
    %1873 = vadd.xlane.f32.xlu0 %v1872
    %v1874 = vpop.xlane.xlu0 %1873
    %v1875 = vsel %vm1733, %v1829, 0.0
    %1876 = vadd.xlane.f32.xlu0 %v1875
    %v1877 = vpop.xlane.xlu0 %1876
    %v1878 = vrcp.pop %v1832
    %v1879 = vrcp.pop %v1835
    %v1880 = vrcp.pop %v1838
    %v1881 = vrcp.pop %v1841
    %v1882 = vrcp.pop %v1844
    %v1883 = vrcp.pop %v1847
    %v1884 = vrcp.pop %v1850
    %v1885 = vrcp.pop %v1853
    %v1886 = vrcp.pop %v1856
    %v1887 = vrcp.pop %v1859
    %v1888 = vrcp.pop %v1862
    %v1889 = vrcp.pop %v1865
    %v1890 = vrcp.pop %v1868
    %v1891 = vrcp.pop %v1871
    %v1892 = vrcp.pop %v1874
    %v1893 = vrcp.pop %v1877
    %v1894 = vmul.f32 %v1799, %v1878
    %v1895 = vmul.f32 %v1801, %v1879
    %v1896 = vmul.f32 %v1803, %v1880
    %v1897 = vmul.f32 %v1805, %v1881
    %v1898 = vmul.f32 %v1807, %v1882
    %v1899 = vmul.f32 %v1809, %v1883
    %v1900 = vmul.f32 %v1811, %v1884
    %v1901 = vmul.f32 %v1813, %v1885
    %v1902 = vmul.f32 %v1815, %v1886
    %v1903 = vmul.f32 %v1817, %v1887
    %v1904 = vmul.f32 %v1819, %v1888
    %v1905 = vmul.f32 %v1821, %v1889
    %v1906 = vmul.f32 %v1823, %v1890
    %v1907 = vmul.f32 %v1825, %v1891
    %v1908 = vmul.f32 %v1827, %v1892
    %v1909 = vmul.f32 %v1829, %v1893
    %v1910 = vpack.c.bf16 %v1894, %v1894
    %v1911 = vpack.c.bf16 %v1895, %v1895
    %v1912 = vpack.c.bf16 %v1896, %v1896
    %v1913 = vpack.c.bf16 %v1897, %v1897
    %v1914 = vpack.c.bf16 %v1898, %v1898
    %v1915 = vpack.c.bf16 %v1899, %v1899
    %v1916 = vpack.c.bf16 %v1900, %v1900
    %v1917 = vpack.c.bf16 %v1901, %v1901
    %v1918 = vpack.c.bf16 %v1902, %v1902
    %v1919 = vpack.c.bf16 %v1903, %v1903
    %v1920 = vpack.c.bf16 %v1904, %v1904
    %v1921 = vpack.c.bf16 %v1905, %v1905
    %v1922 = vpack.c.bf16 %v1906, %v1906
    %v1923 = vpack.c.bf16 %v1907, %v1907
    %v1924 = vpack.c.bf16 %v1908, %v1908
    %v1925 = vpack.c.bf16 %v1909, %v1909
    %v1927 = vsel %vm1733, %v1910, 0
    %vm1929 = vcmask 1043456
    %v1931 = vsel %vm1929, %v980, 0
    %1933 = vmatprep.subr.bf16.mxu0 0
    %1934 = vmatpush1.bf16.msra.mxu0 0
    %1935 = vmatprep.subr.bf16.mxu0 0
    %1936 = vmatpush1.bf16.msra.mxu0 0
    %1937 = vmatprep.subr.bf16.mxu0 0
    %1938 = vmatpush1.bf16.msra.mxu0 0
    %1939 = vmatprep.subr.bf16.mxu0 0
    %1940 = vmatpush1.bf16.msra.mxu0 0
    %1941 = vmatprep.subr.bf16.mxu0 0
    %1942 = vmatpush1.bf16.msra.mxu0 0
    %1943 = vmatprep.subr.bf16.mxu0 0
    %1944 = vmatpush1.bf16.msra.mxu0 0
    %1945 = vmatprep.subr.bf16.mxu0 0
    %1946 = vmatpush1.bf16.msra.mxu0 0
    %1947 = vmatprep.subr.bf16.mxu0 0
    %1948 = vmatpush1.bf16.msra.mxu0 %v1931
    %1949 = vmatprep.subr.bf16.mxu0 0
    %1950 = vmatpush2.bf16.msra.mxu0 0
    %1951 = vmatprep.subr.bf16.mxu0 0
    %1952 = vmatpush2.bf16.msra.mxu0 0
    %1953 = vmatprep.subr.bf16.mxu0 0
    %1954 = vmatpush2.bf16.msra.mxu0 0
    %1955 = vmatprep.subr.bf16.mxu0 0
    %1956 = vmatpush2.bf16.msra.mxu0 0
    %1957 = vmatprep.subr.bf16.mxu0 0
    %1958 = vmatpush2.bf16.msra.mxu0 0
    %1959 = vmatprep.subr.bf16.mxu0 0
    %1960 = vmatpush2.bf16.msra.mxu0 0
    %1961 = vmatprep.subr.bf16.mxu0 0
    %1962 = vmatpush2.bf16.msra.mxu0 0
    %1963 = vmatprep.subr.bf16.mxu0 0
    %1964 = vmatpush2.bf16.msra.mxu0 0
    %1965 = vmatprep.mubr.bf16.mxu0 0
    %1966 = vmatmul.mubr.bf16.gmra.mxu0 %v1927
    %v1967 = vpop.f32.mrf.mxu0
    %v1968 = vadd.f32 0.0, %v1967
    %v1969 = vpop.f32.mrf.mxu0
    %v1970 = vpop.f32.mrf.mxu0
    %v1971 = vpop.f32.mrf.mxu0
    %1972 = vdwg.mxu0
    %v1974 = vsel %vm1733, %v1911, 0
    %v1977 = vsel %vm1929, %v981, 0
    %1979 = vmatprep.subr.bf16.mxu0 0
    %1980 = vmatpush1.bf16.msra.mxu0 0
    %1981 = vmatprep.subr.bf16.mxu0 0
    %1982 = vmatpush1.bf16.msra.mxu0 0
    %1983 = vmatprep.subr.bf16.mxu0 0
    %1984 = vmatpush1.bf16.msra.mxu0 0
    %1985 = vmatprep.subr.bf16.mxu0 0
    %1986 = vmatpush1.bf16.msra.mxu0 0
    %1987 = vmatprep.subr.bf16.mxu0 0
    %1988 = vmatpush1.bf16.msra.mxu0 0
    %1989 = vmatprep.subr.bf16.mxu0 0
    %1990 = vmatpush1.bf16.msra.mxu0 0
    %1991 = vmatprep.subr.bf16.mxu0 0
    %1992 = vmatpush1.bf16.msra.mxu0 0
    %1993 = vmatprep.subr.bf16.mxu0 0
    %1994 = vmatpush1.bf16.msra.mxu0 %v1977
    %1995 = vmatprep.subr.bf16.mxu0 0
    %1996 = vmatpush2.bf16.msra.mxu0 0
    %1997 = vmatprep.subr.bf16.mxu0 0
    %1998 = vmatpush2.bf16.msra.mxu0 0
    %1999 = vmatprep.subr.bf16.mxu0 0
    %2000 = vmatpush2.bf16.msra.mxu0 0
    %2001 = vmatprep.subr.bf16.mxu0 0
    %2002 = vmatpush2.bf16.msra.mxu0 0
    %2003 = vmatprep.subr.bf16.mxu0 0
    %2004 = vmatpush2.bf16.msra.mxu0 0
    %2005 = vmatprep.subr.bf16.mxu0 0
    %2006 = vmatpush2.bf16.msra.mxu0 0
    %2007 = vmatprep.subr.bf16.mxu0 0
    %2008 = vmatpush2.bf16.msra.mxu0 0
    %2009 = vmatprep.subr.bf16.mxu0 0
    %2010 = vmatpush2.bf16.msra.mxu0 0
    %2011 = vmatprep.mubr.bf16.mxu0 0
    %2012 = vmatmul.mubr.bf16.gmra.mxu0 %v1974
    %v2013 = vpop.f32.mrf.mxu0
    %v2014 = vadd.f32 0.0, %v2013
    %v2015 = vpop.f32.mrf.mxu0
    %v2016 = vpop.f32.mrf.mxu0
    %v2017 = vpop.f32.mrf.mxu0
    %2018 = vdwg.mxu0
    %v2020 = vsel %vm1733, %v1912, 0
    %v2023 = vsel %vm1929, %v982, 0
    %2025 = vmatprep.subr.bf16.mxu0 0
    %2026 = vmatpush1.bf16.msra.mxu0 0
    %2027 = vmatprep.subr.bf16.mxu0 0
    %2028 = vmatpush1.bf16.msra.mxu0 0
    %2029 = vmatprep.subr.bf16.mxu0 0
    %2030 = vmatpush1.bf16.msra.mxu0 0
    %2031 = vmatprep.subr.bf16.mxu0 0
    %2032 = vmatpush1.bf16.msra.mxu0 0
    %2033 = vmatprep.subr.bf16.mxu0 0
    %2034 = vmatpush1.bf16.msra.mxu0 0
    %2035 = vmatprep.subr.bf16.mxu0 0
    %2036 = vmatpush1.bf16.msra.mxu0 0
    %2037 = vmatprep.subr.bf16.mxu0 0
    %2038 = vmatpush1.bf16.msra.mxu0 0
    %2039 = vmatprep.subr.bf16.mxu0 0
    %2040 = vmatpush1.bf16.msra.mxu0 %v2023
    %2041 = vmatprep.subr.bf16.mxu0 0
    %2042 = vmatpush2.bf16.msra.mxu0 0
    %2043 = vmatprep.subr.bf16.mxu0 0
    %2044 = vmatpush2.bf16.msra.mxu0 0
    %2045 = vmatprep.subr.bf16.mxu0 0
    %2046 = vmatpush2.bf16.msra.mxu0 0
    %2047 = vmatprep.subr.bf16.mxu0 0
    %2048 = vmatpush2.bf16.msra.mxu0 0
    %2049 = vmatprep.subr.bf16.mxu0 0
    %2050 = vmatpush2.bf16.msra.mxu0 0
    %2051 = vmatprep.subr.bf16.mxu0 0
    %2052 = vmatpush2.bf16.msra.mxu0 0
    %2053 = vmatprep.subr.bf16.mxu0 0
    %2054 = vmatpush2.bf16.msra.mxu0 0
    %2055 = vmatprep.subr.bf16.mxu0 0
    %2056 = vmatpush2.bf16.msra.mxu0 0
    %2057 = vmatprep.mubr.bf16.mxu0 0
    %2058 = vmatmul.mubr.bf16.gmra.mxu0 %v2020
    %v2059 = vpop.f32.mrf.mxu0
    %v2060 = vadd.f32 0.0, %v2059
    %v2061 = vpop.f32.mrf.mxu0
    %v2062 = vpop.f32.mrf.mxu0
    %v2063 = vpop.f32.mrf.mxu0
    %2064 = vdwg.mxu0
    %v2066 = vsel %vm1733, %v1913, 0
    %v2069 = vsel %vm1929, %v983, 0
    %2071 = vmatprep.subr.bf16.mxu0 0
    %2072 = vmatpush1.bf16.msra.mxu0 0
    %2073 = vmatprep.subr.bf16.mxu0 0
    %2074 = vmatpush1.bf16.msra.mxu0 0
    %2075 = vmatprep.subr.bf16.mxu0 0
    %2076 = vmatpush1.bf16.msra.mxu0 0
    %2077 = vmatprep.subr.bf16.mxu0 0
    %2078 = vmatpush1.bf16.msra.mxu0 0
    %2079 = vmatprep.subr.bf16.mxu0 0
    %2080 = vmatpush1.bf16.msra.mxu0 0
    %2081 = vmatprep.subr.bf16.mxu0 0
    %2082 = vmatpush1.bf16.msra.mxu0 0
    %2083 = vmatprep.subr.bf16.mxu0 0
    %2084 = vmatpush1.bf16.msra.mxu0 0
    %2085 = vmatprep.subr.bf16.mxu0 0
    %2086 = vmatpush1.bf16.msra.mxu0 %v2069
    %2087 = vmatprep.subr.bf16.mxu0 0
    %2088 = vmatpush2.bf16.msra.mxu0 0
    %2089 = vmatprep.subr.bf16.mxu0 0
    %2090 = vmatpush2.bf16.msra.mxu0 0
    %2091 = vmatprep.subr.bf16.mxu0 0
    %2092 = vmatpush2.bf16.msra.mxu0 0
    %2093 = vmatprep.subr.bf16.mxu0 0
    %2094 = vmatpush2.bf16.msra.mxu0 0
    %2095 = vmatprep.subr.bf16.mxu0 0
    %2096 = vmatpush2.bf16.msra.mxu0 0
    %2097 = vmatprep.subr.bf16.mxu0 0
    %2098 = vmatpush2.bf16.msra.mxu0 0
    %2099 = vmatprep.subr.bf16.mxu0 0
    %2100 = vmatpush2.bf16.msra.mxu0 0
    %2101 = vmatprep.subr.bf16.mxu0 0
    %2102 = vmatpush2.bf16.msra.mxu0 0
    %2103 = vmatprep.mubr.bf16.mxu0 0
    %2104 = vmatmul.mubr.bf16.gmra.mxu0 %v2066
    %v2105 = vpop.f32.mrf.mxu0
    %v2106 = vadd.f32 0.0, %v2105
    %v2107 = vpop.f32.mrf.mxu0
    %v2108 = vpop.f32.mrf.mxu0
    %v2109 = vpop.f32.mrf.mxu0
    %2110 = vdwg.mxu0
    %v2112 = vsel %vm1733, %v1914, 0
    %v2115 = vsel %vm1929, %v984, 0
    %2117 = vmatprep.subr.bf16.mxu0 0
    %2118 = vmatpush1.bf16.msra.mxu0 0
    %2119 = vmatprep.subr.bf16.mxu0 0
    %2120 = vmatpush1.bf16.msra.mxu0 0
    %2121 = vmatprep.subr.bf16.mxu0 0
    %2122 = vmatpush1.bf16.msra.mxu0 0
    %2123 = vmatprep.subr.bf16.mxu0 0
    %2124 = vmatpush1.bf16.msra.mxu0 0
    %2125 = vmatprep.subr.bf16.mxu0 0
    %2126 = vmatpush1.bf16.msra.mxu0 0
    %2127 = vmatprep.subr.bf16.mxu0 0
    %2128 = vmatpush1.bf16.msra.mxu0 0
    %2129 = vmatprep.subr.bf16.mxu0 0
    %2130 = vmatpush1.bf16.msra.mxu0 0
    %2131 = vmatprep.subr.bf16.mxu0 0
    %2132 = vmatpush1.bf16.msra.mxu0 %v2115
    %2133 = vmatprep.subr.bf16.mxu0 0
    %2134 = vmatpush2.bf16.msra.mxu0 0
    %2135 = vmatprep.subr.bf16.mxu0 0
    %2136 = vmatpush2.bf16.msra.mxu0 0
    %2137 = vmatprep.subr.bf16.mxu0 0
    %2138 = vmatpush2.bf16.msra.mxu0 0
    %2139 = vmatprep.subr.bf16.mxu0 0
    %2140 = vmatpush2.bf16.msra.mxu0 0
    %2141 = vmatprep.subr.bf16.mxu0 0
    %2142 = vmatpush2.bf16.msra.mxu0 0
    %2143 = vmatprep.subr.bf16.mxu0 0
    %2144 = vmatpush2.bf16.msra.mxu0 0
    %2145 = vmatprep.subr.bf16.mxu0 0
    %2146 = vmatpush2.bf16.msra.mxu0 0
    %2147 = vmatprep.subr.bf16.mxu0 0
    %2148 = vmatpush2.bf16.msra.mxu0 0
    %2149 = vmatprep.mubr.bf16.mxu0 0
    %2150 = vmatmul.mubr.bf16.gmra.mxu0 %v2112
    %v2151 = vpop.f32.mrf.mxu0
    %v2152 = vadd.f32 0.0, %v2151
    %v2153 = vpop.f32.mrf.mxu0
    %v2154 = vpop.f32.mrf.mxu0
    %v2155 = vpop.f32.mrf.mxu0
    %2156 = vdwg.mxu0
    %v2158 = vsel %vm1733, %v1915, 0
    %v2161 = vsel %vm1929, %v985, 0
    %2163 = vmatprep.subr.bf16.mxu0 0
    %2164 = vmatpush1.bf16.msra.mxu0 0
    %2165 = vmatprep.subr.bf16.mxu0 0
    %2166 = vmatpush1.bf16.msra.mxu0 0
    %2167 = vmatprep.subr.bf16.mxu0 0
    %2168 = vmatpush1.bf16.msra.mxu0 0
    %2169 = vmatprep.subr.bf16.mxu0 0
    %2170 = vmatpush1.bf16.msra.mxu0 0
    %2171 = vmatprep.subr.bf16.mxu0 0
    %2172 = vmatpush1.bf16.msra.mxu0 0
    %2173 = vmatprep.subr.bf16.mxu0 0
    %2174 = vmatpush1.bf16.msra.mxu0 0
    %2175 = vmatprep.subr.bf16.mxu0 0
    %2176 = vmatpush1.bf16.msra.mxu0 0
    %2177 = vmatprep.subr.bf16.mxu0 0
    %2178 = vmatpush1.bf16.msra.mxu0 %v2161
    %2179 = vmatprep.subr.bf16.mxu0 0
    %2180 = vmatpush2.bf16.msra.mxu0 0
    %2181 = vmatprep.subr.bf16.mxu0 0
    %2182 = vmatpush2.bf16.msra.mxu0 0
    %2183 = vmatprep.subr.bf16.mxu0 0
    %2184 = vmatpush2.bf16.msra.mxu0 0
    %2185 = vmatprep.subr.bf16.mxu0 0
    %2186 = vmatpush2.bf16.msra.mxu0 0
    %2187 = vmatprep.subr.bf16.mxu0 0
    %2188 = vmatpush2.bf16.msra.mxu0 0
    %2189 = vmatprep.subr.bf16.mxu0 0
    %2190 = vmatpush2.bf16.msra.mxu0 0
    %2191 = vmatprep.subr.bf16.mxu0 0
    %2192 = vmatpush2.bf16.msra.mxu0 0
    %2193 = vmatprep.subr.bf16.mxu0 0
    %2194 = vmatpush2.bf16.msra.mxu0 0
    %2195 = vmatprep.mubr.bf16.mxu0 0
    %2196 = vmatmul.mubr.bf16.gmra.mxu0 %v2158
    %v2197 = vpop.f32.mrf.mxu0
    %v2198 = vadd.f32 0.0, %v2197
    %v2199 = vpop.f32.mrf.mxu0
    %v2200 = vpop.f32.mrf.mxu0
    %v2201 = vpop.f32.mrf.mxu0
    %2202 = vdwg.mxu0
    %v2204 = vsel %vm1733, %v1916, 0
    %v2207 = vsel %vm1929, %v986, 0
    %2209 = vmatprep.subr.bf16.mxu0 0
    %2210 = vmatpush1.bf16.msra.mxu0 0
    %2211 = vmatprep.subr.bf16.mxu0 0
    %2212 = vmatpush1.bf16.msra.mxu0 0
    %2213 = vmatprep.subr.bf16.mxu0 0
    %2214 = vmatpush1.bf16.msra.mxu0 0
    %2215 = vmatprep.subr.bf16.mxu0 0
    %2216 = vmatpush1.bf16.msra.mxu0 0
    %2217 = vmatprep.subr.bf16.mxu0 0
    %2218 = vmatpush1.bf16.msra.mxu0 0
    %2219 = vmatprep.subr.bf16.mxu0 0
    %2220 = vmatpush1.bf16.msra.mxu0 0
    %2221 = vmatprep.subr.bf16.mxu0 0
    %2222 = vmatpush1.bf16.msra.mxu0 0
    %2223 = vmatprep.subr.bf16.mxu0 0
    %2224 = vmatpush1.bf16.msra.mxu0 %v2207
    %2225 = vmatprep.subr.bf16.mxu0 0
    %2226 = vmatpush2.bf16.msra.mxu0 0
    %2227 = vmatprep.subr.bf16.mxu0 0
    %2228 = vmatpush2.bf16.msra.mxu0 0
    %2229 = vmatprep.subr.bf16.mxu0 0
    %2230 = vmatpush2.bf16.msra.mxu0 0
    %2231 = vmatprep.subr.bf16.mxu0 0
    %2232 = vmatpush2.bf16.msra.mxu0 0
    %2233 = vmatprep.subr.bf16.mxu0 0
    %2234 = vmatpush2.bf16.msra.mxu0 0
    %2235 = vmatprep.subr.bf16.mxu0 0
    %2236 = vmatpush2.bf16.msra.mxu0 0
    %2237 = vmatprep.subr.bf16.mxu0 0
    %2238 = vmatpush2.bf16.msra.mxu0 0
    %2239 = vmatprep.subr.bf16.mxu0 0
    %2240 = vmatpush2.bf16.msra.mxu0 0
    %2241 = vmatprep.mubr.bf16.mxu0 0
    %2242 = vmatmul.mubr.bf16.gmra.mxu0 %v2204
    %v2243 = vpop.f32.mrf.mxu0
    %v2244 = vadd.f32 0.0, %v2243
    %v2245 = vpop.f32.mrf.mxu0
    %v2246 = vpop.f32.mrf.mxu0
    %v2247 = vpop.f32.mrf.mxu0
    %2248 = vdwg.mxu0
    %v2250 = vsel %vm1733, %v1917, 0
    %v2253 = vsel %vm1929, %v987, 0
    %2255 = vmatprep.subr.bf16.mxu0 0
    %2256 = vmatpush1.bf16.msra.mxu0 0
    %2257 = vmatprep.subr.bf16.mxu0 0
    %2258 = vmatpush1.bf16.msra.mxu0 0
    %2259 = vmatprep.subr.bf16.mxu0 0
    %2260 = vmatpush1.bf16.msra.mxu0 0
    %2261 = vmatprep.subr.bf16.mxu0 0
    %2262 = vmatpush1.bf16.msra.mxu0 0
    %2263 = vmatprep.subr.bf16.mxu0 0
    %2264 = vmatpush1.bf16.msra.mxu0 0
    %2265 = vmatprep.subr.bf16.mxu0 0
    %2266 = vmatpush1.bf16.msra.mxu0 0
    %2267 = vmatprep.subr.bf16.mxu0 0
    %2268 = vmatpush1.bf16.msra.mxu0 0
    %2269 = vmatprep.subr.bf16.mxu0 0
    %2270 = vmatpush1.bf16.msra.mxu0 %v2253
    %2271 = vmatprep.subr.bf16.mxu0 0
    %2272 = vmatpush2.bf16.msra.mxu0 0
    %2273 = vmatprep.subr.bf16.mxu0 0
    %2274 = vmatpush2.bf16.msra.mxu0 0
    %2275 = vmatprep.subr.bf16.mxu0 0
    %2276 = vmatpush2.bf16.msra.mxu0 0
    %2277 = vmatprep.subr.bf16.mxu0 0
    %2278 = vmatpush2.bf16.msra.mxu0 0
    %2279 = vmatprep.subr.bf16.mxu0 0
    %2280 = vmatpush2.bf16.msra.mxu0 0
    %2281 = vmatprep.subr.bf16.mxu0 0
    %2282 = vmatpush2.bf16.msra.mxu0 0
    %2283 = vmatprep.subr.bf16.mxu0 0
    %2284 = vmatpush2.bf16.msra.mxu0 0
    %2285 = vmatprep.subr.bf16.mxu0 0
    %2286 = vmatpush2.bf16.msra.mxu0 0
    %2287 = vmatprep.mubr.bf16.mxu0 0
    %2288 = vmatmul.mubr.bf16.gmra.mxu0 %v2250
    %v2289 = vpop.f32.mrf.mxu0
    %v2290 = vadd.f32 0.0, %v2289
    %v2291 = vpop.f32.mrf.mxu0
    %v2292 = vpop.f32.mrf.mxu0
    %v2293 = vpop.f32.mrf.mxu0
    %2294 = vdwg.mxu0
    %v2296 = vsel %vm1733, %v1918, 0
    %v2299 = vsel %vm1929, %v988, 0
    %2301 = vmatprep.subr.bf16.mxu0 0
    %2302 = vmatpush1.bf16.msra.mxu0 0
    %2303 = vmatprep.subr.bf16.mxu0 0
    %2304 = vmatpush1.bf16.msra.mxu0 0
    %2305 = vmatprep.subr.bf16.mxu0 0
    %2306 = vmatpush1.bf16.msra.mxu0 0
    %2307 = vmatprep.subr.bf16.mxu0 0
    %2308 = vmatpush1.bf16.msra.mxu0 0
    %2309 = vmatprep.subr.bf16.mxu0 0
    %2310 = vmatpush1.bf16.msra.mxu0 0
    %2311 = vmatprep.subr.bf16.mxu0 0
    %2312 = vmatpush1.bf16.msra.mxu0 0
    %2313 = vmatprep.subr.bf16.mxu0 0
    %2314 = vmatpush1.bf16.msra.mxu0 0
    %2315 = vmatprep.subr.bf16.mxu0 0
    %2316 = vmatpush1.bf16.msra.mxu0 %v2299
    %2317 = vmatprep.subr.bf16.mxu0 0
    %2318 = vmatpush2.bf16.msra.mxu0 0
    %2319 = vmatprep.subr.bf16.mxu0 0
    %2320 = vmatpush2.bf16.msra.mxu0 0
    %2321 = vmatprep.subr.bf16.mxu0 0
    %2322 = vmatpush2.bf16.msra.mxu0 0
    %2323 = vmatprep.subr.bf16.mxu0 0
    %2324 = vmatpush2.bf16.msra.mxu0 0
    %2325 = vmatprep.subr.bf16.mxu0 0
    %2326 = vmatpush2.bf16.msra.mxu0 0
    %2327 = vmatprep.subr.bf16.mxu0 0
    %2328 = vmatpush2.bf16.msra.mxu0 0
    %2329 = vmatprep.subr.bf16.mxu0 0
    %2330 = vmatpush2.bf16.msra.mxu0 0
    %2331 = vmatprep.subr.bf16.mxu0 0
    %2332 = vmatpush2.bf16.msra.mxu0 0
    %2333 = vmatprep.mubr.bf16.mxu0 0
    %2334 = vmatmul.mubr.bf16.gmra.mxu0 %v2296
    %v2335 = vpop.f32.mrf.mxu0
    %v2336 = vadd.f32 0.0, %v2335
    %v2337 = vpop.f32.mrf.mxu0
    %v2338 = vpop.f32.mrf.mxu0
    %v2339 = vpop.f32.mrf.mxu0
    %2340 = vdwg.mxu0
    %v2342 = vsel %vm1733, %v1919, 0
    %v2345 = vsel %vm1929, %v989, 0
    %2347 = vmatprep.subr.bf16.mxu0 0
    %2348 = vmatpush1.bf16.msra.mxu0 0
    %2349 = vmatprep.subr.bf16.mxu0 0
    %2350 = vmatpush1.bf16.msra.mxu0 0
    %2351 = vmatprep.subr.bf16.mxu0 0
    %2352 = vmatpush1.bf16.msra.mxu0 0
    %2353 = vmatprep.subr.bf16.mxu0 0
    %2354 = vmatpush1.bf16.msra.mxu0 0
    %2355 = vmatprep.subr.bf16.mxu0 0
    %2356 = vmatpush1.bf16.msra.mxu0 0
    %2357 = vmatprep.subr.bf16.mxu0 0
    %2358 = vmatpush1.bf16.msra.mxu0 0
    %2359 = vmatprep.subr.bf16.mxu0 0
    %2360 = vmatpush1.bf16.msra.mxu0 0
    %2361 = vmatprep.subr.bf16.mxu0 0
    %2362 = vmatpush1.bf16.msra.mxu0 %v2345
    %2363 = vmatprep.subr.bf16.mxu0 0
    %2364 = vmatpush2.bf16.msra.mxu0 0
    %2365 = vmatprep.subr.bf16.mxu0 0
    %2366 = vmatpush2.bf16.msra.mxu0 0
    %2367 = vmatprep.subr.bf16.mxu0 0
    %2368 = vmatpush2.bf16.msra.mxu0 0
    %2369 = vmatprep.subr.bf16.mxu0 0
    %2370 = vmatpush2.bf16.msra.mxu0 0
    %2371 = vmatprep.subr.bf16.mxu0 0
    %2372 = vmatpush2.bf16.msra.mxu0 0
    %2373 = vmatprep.subr.bf16.mxu0 0
    %2374 = vmatpush2.bf16.msra.mxu0 0
    %2375 = vmatprep.subr.bf16.mxu0 0
    %2376 = vmatpush2.bf16.msra.mxu0 0
    %2377 = vmatprep.subr.bf16.mxu0 0
    %2378 = vmatpush2.bf16.msra.mxu0 0
    %2379 = vmatprep.mubr.bf16.mxu0 0
    %2380 = vmatmul.mubr.bf16.gmra.mxu0 %v2342
    %v2381 = vpop.f32.mrf.mxu0
    %v2382 = vadd.f32 0.0, %v2381
    %v2383 = vpop.f32.mrf.mxu0
    %v2384 = vpop.f32.mrf.mxu0
    %v2385 = vpop.f32.mrf.mxu0
    %2386 = vdwg.mxu0
    %v2388 = vsel %vm1733, %v1920, 0
    %v2391 = vsel %vm1929, %v990, 0
    %2393 = vmatprep.subr.bf16.mxu0 0
    %2394 = vmatpush1.bf16.msra.mxu0 0
    %2395 = vmatprep.subr.bf16.mxu0 0
    %2396 = vmatpush1.bf16.msra.mxu0 0
    %2397 = vmatprep.subr.bf16.mxu0 0
    %2398 = vmatpush1.bf16.msra.mxu0 0
    %2399 = vmatprep.subr.bf16.mxu0 0
    %2400 = vmatpush1.bf16.msra.mxu0 0
    %2401 = vmatprep.subr.bf16.mxu0 0
    %2402 = vmatpush1.bf16.msra.mxu0 0
    %2403 = vmatprep.subr.bf16.mxu0 0
    %2404 = vmatpush1.bf16.msra.mxu0 0
    %2405 = vmatprep.subr.bf16.mxu0 0
    %2406 = vmatpush1.bf16.msra.mxu0 0
    %2407 = vmatprep.subr.bf16.mxu0 0
    %2408 = vmatpush1.bf16.msra.mxu0 %v2391
    %2409 = vmatprep.subr.bf16.mxu0 0
    %2410 = vmatpush2.bf16.msra.mxu0 0
    %2411 = vmatprep.subr.bf16.mxu0 0
    %2412 = vmatpush2.bf16.msra.mxu0 0
    %2413 = vmatprep.subr.bf16.mxu0 0
    %2414 = vmatpush2.bf16.msra.mxu0 0
    %2415 = vmatprep.subr.bf16.mxu0 0
    %2416 = vmatpush2.bf16.msra.mxu0 0
    %2417 = vmatprep.subr.bf16.mxu0 0
    %2418 = vmatpush2.bf16.msra.mxu0 0
    %2419 = vmatprep.subr.bf16.mxu0 0
    %2420 = vmatpush2.bf16.msra.mxu0 0
    %2421 = vmatprep.subr.bf16.mxu0 0
    %2422 = vmatpush2.bf16.msra.mxu0 0
    %2423 = vmatprep.subr.bf16.mxu0 0
    %2424 = vmatpush2.bf16.msra.mxu0 0
    %2425 = vmatprep.mubr.bf16.mxu0 0
    %2426 = vmatmul.mubr.bf16.gmra.mxu0 %v2388
    %v2427 = vpop.f32.mrf.mxu0
    %v2428 = vadd.f32 0.0, %v2427
    %v2429 = vpop.f32.mrf.mxu0
    %v2430 = vpop.f32.mrf.mxu0
    %v2431 = vpop.f32.mrf.mxu0
    %2432 = vdwg.mxu0
    %v2434 = vsel %vm1733, %v1921, 0
    %v2437 = vsel %vm1929, %v991, 0
    %2439 = vmatprep.subr.bf16.mxu0 0
    %2440 = vmatpush1.bf16.msra.mxu0 0
    %2441 = vmatprep.subr.bf16.mxu0 0
    %2442 = vmatpush1.bf16.msra.mxu0 0
    %2443 = vmatprep.subr.bf16.mxu0 0
    %2444 = vmatpush1.bf16.msra.mxu0 0
    %2445 = vmatprep.subr.bf16.mxu0 0
    %2446 = vmatpush1.bf16.msra.mxu0 0
    %2447 = vmatprep.subr.bf16.mxu0 0
    %2448 = vmatpush1.bf16.msra.mxu0 0
    %2449 = vmatprep.subr.bf16.mxu0 0
    %2450 = vmatpush1.bf16.msra.mxu0 0
    %2451 = vmatprep.subr.bf16.mxu0 0
    %2452 = vmatpush1.bf16.msra.mxu0 0
    %2453 = vmatprep.subr.bf16.mxu0 0
    %2454 = vmatpush1.bf16.msra.mxu0 %v2437
    %2455 = vmatprep.subr.bf16.mxu0 0
    %2456 = vmatpush2.bf16.msra.mxu0 0
    %2457 = vmatprep.subr.bf16.mxu0 0
    %2458 = vmatpush2.bf16.msra.mxu0 0
    %2459 = vmatprep.subr.bf16.mxu0 0
    %2460 = vmatpush2.bf16.msra.mxu0 0
    %2461 = vmatprep.subr.bf16.mxu0 0
    %2462 = vmatpush2.bf16.msra.mxu0 0
    %2463 = vmatprep.subr.bf16.mxu0 0
    %2464 = vmatpush2.bf16.msra.mxu0 0
    %2465 = vmatprep.subr.bf16.mxu0 0
    %2466 = vmatpush2.bf16.msra.mxu0 0
    %2467 = vmatprep.subr.bf16.mxu0 0
    %2468 = vmatpush2.bf16.msra.mxu0 0
    %2469 = vmatprep.subr.bf16.mxu0 0
    %2470 = vmatpush2.bf16.msra.mxu0 0
    %2471 = vmatprep.mubr.bf16.mxu0 0
    %2472 = vmatmul.mubr.bf16.gmra.mxu0 %v2434
    %v2473 = vpop.f32.mrf.mxu0
    %v2474 = vadd.f32 0.0, %v2473
    %v2475 = vpop.f32.mrf.mxu0
    %v2476 = vpop.f32.mrf.mxu0
    %v2477 = vpop.f32.mrf.mxu0
    %2478 = vdwg.mxu0
    %v2480 = vsel %vm1733, %v1922, 0
    %v2483 = vsel %vm1929, %v992, 0
    %2485 = vmatprep.subr.bf16.mxu0 0
    %2486 = vmatpush1.bf16.msra.mxu0 0
    %2487 = vmatprep.subr.bf16.mxu0 0
    %2488 = vmatpush1.bf16.msra.mxu0 0
    %2489 = vmatprep.subr.bf16.mxu0 0
    %2490 = vmatpush1.bf16.msra.mxu0 0
    %2491 = vmatprep.subr.bf16.mxu0 0
    %2492 = vmatpush1.bf16.msra.mxu0 0
    %2493 = vmatprep.subr.bf16.mxu0 0
    %2494 = vmatpush1.bf16.msra.mxu0 0
    %2495 = vmatprep.subr.bf16.mxu0 0
    %2496 = vmatpush1.bf16.msra.mxu0 0
    %2497 = vmatprep.subr.bf16.mxu0 0
    %2498 = vmatpush1.bf16.msra.mxu0 0
    %2499 = vmatprep.subr.bf16.mxu0 0
    %2500 = vmatpush1.bf16.msra.mxu0 %v2483
    %2501 = vmatprep.subr.bf16.mxu0 0
    %2502 = vmatpush2.bf16.msra.mxu0 0
    %2503 = vmatprep.subr.bf16.mxu0 0
    %2504 = vmatpush2.bf16.msra.mxu0 0
    %2505 = vmatprep.subr.bf16.mxu0 0
    %2506 = vmatpush2.bf16.msra.mxu0 0
    %2507 = vmatprep.subr.bf16.mxu0 0
    %2508 = vmatpush2.bf16.msra.mxu0 0
    %2509 = vmatprep.subr.bf16.mxu0 0
    %2510 = vmatpush2.bf16.msra.mxu0 0
    %2511 = vmatprep.subr.bf16.mxu0 0
    %2512 = vmatpush2.bf16.msra.mxu0 0
    %2513 = vmatprep.subr.bf16.mxu0 0
    %2514 = vmatpush2.bf16.msra.mxu0 0
    %2515 = vmatprep.subr.bf16.mxu0 0
    %2516 = vmatpush2.bf16.msra.mxu0 0
    %2517 = vmatprep.mubr.bf16.mxu0 0
    %2518 = vmatmul.mubr.bf16.gmra.mxu0 %v2480
    %v2519 = vpop.f32.mrf.mxu0
    %v2520 = vadd.f32 0.0, %v2519
    %v2521 = vpop.f32.mrf.mxu0
    %v2522 = vpop.f32.mrf.mxu0
    %v2523 = vpop.f32.mrf.mxu0
    %2524 = vdwg.mxu0
    %v2526 = vsel %vm1733, %v1923, 0
    %v2529 = vsel %vm1929, %v993, 0
    %2531 = vmatprep.subr.bf16.mxu0 0
    %2532 = vmatpush1.bf16.msra.mxu0 0
    %2533 = vmatprep.subr.bf16.mxu0 0
    %2534 = vmatpush1.bf16.msra.mxu0 0
    %2535 = vmatprep.subr.bf16.mxu0 0
    %2536 = vmatpush1.bf16.msra.mxu0 0
    %2537 = vmatprep.subr.bf16.mxu0 0
    %2538 = vmatpush1.bf16.msra.mxu0 0
    %2539 = vmatprep.subr.bf16.mxu0 0
    %2540 = vmatpush1.bf16.msra.mxu0 0
    %2541 = vmatprep.subr.bf16.mxu0 0
    %2542 = vmatpush1.bf16.msra.mxu0 0
    %2543 = vmatprep.subr.bf16.mxu0 0
    %2544 = vmatpush1.bf16.msra.mxu0 0
    %2545 = vmatprep.subr.bf16.mxu0 0
    %2546 = vmatpush1.bf16.msra.mxu0 %v2529
    %2547 = vmatprep.subr.bf16.mxu0 0
    %2548 = vmatpush2.bf16.msra.mxu0 0
    %2549 = vmatprep.subr.bf16.mxu0 0
    %2550 = vmatpush2.bf16.msra.mxu0 0
    %2551 = vmatprep.subr.bf16.mxu0 0
    %2552 = vmatpush2.bf16.msra.mxu0 0
    %2553 = vmatprep.subr.bf16.mxu0 0
    %2554 = vmatpush2.bf16.msra.mxu0 0
    %2555 = vmatprep.subr.bf16.mxu0 0
    %2556 = vmatpush2.bf16.msra.mxu0 0
    %2557 = vmatprep.subr.bf16.mxu0 0
    %2558 = vmatpush2.bf16.msra.mxu0 0
    %2559 = vmatprep.subr.bf16.mxu0 0
    %2560 = vmatpush2.bf16.msra.mxu0 0
    %2561 = vmatprep.subr.bf16.mxu0 0
    %2562 = vmatpush2.bf16.msra.mxu0 0
    %2563 = vmatprep.mubr.bf16.mxu0 0
    %2564 = vmatmul.mubr.bf16.gmra.mxu0 %v2526
    %v2565 = vpop.f32.mrf.mxu0
    %v2566 = vadd.f32 0.0, %v2565
    %v2567 = vpop.f32.mrf.mxu0
    %v2568 = vpop.f32.mrf.mxu0
    %v2569 = vpop.f32.mrf.mxu0
    %2570 = vdwg.mxu0
    %v2572 = vsel %vm1733, %v1924, 0
    %v2575 = vsel %vm1929, %v994, 0
    %2577 = vmatprep.subr.bf16.mxu0 0
    %2578 = vmatpush1.bf16.msra.mxu0 0
    %2579 = vmatprep.subr.bf16.mxu0 0
    %2580 = vmatpush1.bf16.msra.mxu0 0
    %2581 = vmatprep.subr.bf16.mxu0 0
    %2582 = vmatpush1.bf16.msra.mxu0 0
    %2583 = vmatprep.subr.bf16.mxu0 0
    %2584 = vmatpush1.bf16.msra.mxu0 0
    %2585 = vmatprep.subr.bf16.mxu0 0
    %2586 = vmatpush1.bf16.msra.mxu0 0
    %2587 = vmatprep.subr.bf16.mxu0 0
    %2588 = vmatpush1.bf16.msra.mxu0 0
    %2589 = vmatprep.subr.bf16.mxu0 0
    %2590 = vmatpush1.bf16.msra.mxu0 0
    %2591 = vmatprep.subr.bf16.mxu0 0
    %2592 = vmatpush1.bf16.msra.mxu0 %v2575
    %2593 = vmatprep.subr.bf16.mxu0 0
    %2594 = vmatpush2.bf16.msra.mxu0 0
    %2595 = vmatprep.subr.bf16.mxu0 0
    %2596 = vmatpush2.bf16.msra.mxu0 0
    %2597 = vmatprep.subr.bf16.mxu0 0
    %2598 = vmatpush2.bf16.msra.mxu0 0
    %2599 = vmatprep.subr.bf16.mxu0 0
    %2600 = vmatpush2.bf16.msra.mxu0 0
    %2601 = vmatprep.subr.bf16.mxu0 0
    %2602 = vmatpush2.bf16.msra.mxu0 0
    %2603 = vmatprep.subr.bf16.mxu0 0
    %2604 = vmatpush2.bf16.msra.mxu0 0
    %2605 = vmatprep.subr.bf16.mxu0 0
    %2606 = vmatpush2.bf16.msra.mxu0 0
    %2607 = vmatprep.subr.bf16.mxu0 0
    %2608 = vmatpush2.bf16.msra.mxu0 0
    %2609 = vmatprep.mubr.bf16.mxu0 0
    %2610 = vmatmul.mubr.bf16.gmra.mxu0 %v2572
    %v2611 = vpop.f32.mrf.mxu0
    %v2612 = vadd.f32 0.0, %v2611
    %v2613 = vpop.f32.mrf.mxu0
    %v2614 = vpop.f32.mrf.mxu0
    %v2615 = vpop.f32.mrf.mxu0
    %2616 = vdwg.mxu0
    %v2618 = vsel %vm1733, %v1925, 0
    %v2621 = vsel %vm1929, %v995, 0
    %2623 = vmatprep.subr.bf16.mxu0 0
    %2624 = vmatpush1.bf16.msra.mxu0 0
    %2625 = vmatprep.subr.bf16.mxu0 0
    %2626 = vmatpush1.bf16.msra.mxu0 0
    %2627 = vmatprep.subr.bf16.mxu0 0
    %2628 = vmatpush1.bf16.msra.mxu0 0
    %2629 = vmatprep.subr.bf16.mxu0 0
    %2630 = vmatpush1.bf16.msra.mxu0 0
    %2631 = vmatprep.subr.bf16.mxu0 0
    %2632 = vmatpush1.bf16.msra.mxu0 0
    %2633 = vmatprep.subr.bf16.mxu0 0
    %2634 = vmatpush1.bf16.msra.mxu0 0
    %2635 = vmatprep.subr.bf16.mxu0 0
    %2636 = vmatpush1.bf16.msra.mxu0 0
    %2637 = vmatprep.subr.bf16.mxu0 0
    %2638 = vmatpush1.bf16.msra.mxu0 %v2621
    %2639 = vmatprep.subr.bf16.mxu0 0
    %2640 = vmatpush2.bf16.msra.mxu0 0
    %2641 = vmatprep.subr.bf16.mxu0 0
    %2642 = vmatpush2.bf16.msra.mxu0 0
    %2643 = vmatprep.subr.bf16.mxu0 0
    %2644 = vmatpush2.bf16.msra.mxu0 0
    %2645 = vmatprep.subr.bf16.mxu0 0
    %2646 = vmatpush2.bf16.msra.mxu0 0
    %2647 = vmatprep.subr.bf16.mxu0 0
    %2648 = vmatpush2.bf16.msra.mxu0 0
    %2649 = vmatprep.subr.bf16.mxu0 0
    %2650 = vmatpush2.bf16.msra.mxu0 0
    %2651 = vmatprep.subr.bf16.mxu0 0
    %2652 = vmatpush2.bf16.msra.mxu0 0
    %2653 = vmatprep.subr.bf16.mxu0 0
    %2654 = vmatpush2.bf16.msra.mxu0 0
    %2655 = vmatprep.mubr.bf16.mxu0 0
    %2656 = vmatmul.mubr.bf16.gmra.mxu0 %v2618
    %v2657 = vpop.f32.mrf.mxu0
    %v2658 = vadd.f32 0.0, %v2657
    %v2659 = vpop.f32.mrf.mxu0
    %v2660 = vpop.f32.mrf.mxu0
    %v2661 = vpop.f32.mrf.mxu0
    %2662 = vdwg.mxu0
    %2665 = vrot.lane.b32.xlu0 %v2060, 32
    %v2666 = vpop.permute.xlu0 %2665
    %2667 = vrot.lane.b32.xlu0 %v2106, 32
    %v2668 = vpop.permute.xlu0 %2667
    %2673 = vrot.lane.b32.xlu0 %v2152, 64
    %v2674 = vpop.permute.xlu0 %2673
    %2675 = vrot.lane.b32.xlu0 %v2198, 64
    %v2676 = vpop.permute.xlu0 %2675
    %2681 = vrot.lane.b32.xlu0 %v2244, 96
    %v2682 = vpop.permute.xlu0 %2681
    %2683 = vrot.lane.b32.xlu0 %v2290, 96
    %v2684 = vpop.permute.xlu0 %2683
    %2689 = vrot.lane.b32.xlu0 %v2428, 32
    %v2690 = vpop.permute.xlu0 %2689
    %2691 = vrot.lane.b32.xlu0 %v2474, 32
    %v2692 = vpop.permute.xlu0 %2691
    %2697 = vrot.lane.b32.xlu0 %v2520, 64
    %v2698 = vpop.permute.xlu0 %2697
    %2699 = vrot.lane.b32.xlu0 %v2566, 64
    %v2700 = vpop.permute.xlu0 %2699
    %2705 = vrot.lane.b32.xlu0 %v2612, 96
    %v2706 = vpop.permute.xlu0 %2705
    %2707 = vrot.lane.b32.xlu0 %v2658, 96
    %v2708 = vpop.permute.xlu0 %2707
    %v2711 = vsel %vm996, %v1968, %v2666
    %v2712 = vsel %vm996, %v2014, %v2668
    %vm2713 = vcmask 523264
    %v2714 = vsel %vm2713, %v2711, %v2674
    %v2715 = vsel %vm2713, %v2712, %v2676
    %vm2716 = vcmask 785408
    %v2717 = vsel %vm2716, %v2714, %v2682
    %v2718 = vsel %vm2716, %v2715, %v2684
    %v2719 = vsel %vm996, %v2336, %v2690
    %v2720 = vsel %vm996, %v2382, %v2692
    %v2721 = vsel %vm2713, %v2719, %v2698
    %v2722 = vsel %vm2713, %v2720, %v2700
    %v2723 = vsel %vm2716, %v2721, %v2706
    %v2724 = vsel %vm2716, %v2722, %v2708
    %v2725 = vpack.c.bf16 %v2718, %v2717
    %v2726 = vpack.c.bf16 %v2724, %v2723
    %v2727 = vld [vmem:[#allocation8] sm:$0xff]
    %v2728 = vld [vmem:[#allocation8 + $0x8] sm:$0xff]
    %v2729 = vld [vmem:[#allocation8 + $0x10] sm:$0xff]
    %v2730 = vld [vmem:[#allocation8 + $0x18] sm:$0xff]
    %v2731 = vld [vmem:[#allocation8 + $0x20] sm:$0xff]
    %v2732 = vld [vmem:[#allocation8 + $0x28] sm:$0xff]
    %v2733 = vld [vmem:[#allocation8 + $0x30] sm:$0xff]
    %v2734 = vld [vmem:[#allocation8 + $0x38] sm:$0xff]
    %v2735 = vld [vmem:[#allocation8 + $0x40] sm:$0xff]
    %v2736 = vld [vmem:[#allocation8 + $0x48] sm:$0xff]
    %v2737 = vld [vmem:[#allocation8 + $0x50] sm:$0xff]
    %v2738 = vld [vmem:[#allocation8 + $0x58] sm:$0xff]
    %v2739 = vld [vmem:[#allocation8 + $0x60] sm:$0xff]
    %v2740 = vld [vmem:[#allocation8 + $0x68] sm:$0xff]
    %v2741 = vld [vmem:[#allocation8 + $0x70] sm:$0xff]
    %v2742 = vld [vmem:[#allocation8 + $0x78] sm:$0xff]
    %v2743 = vld [vmem:[#allocation8 + $0x80] sm:$0xff]
    %v2744 = vld [vmem:[#allocation8 + $0x88] sm:$0xff]
    %v2745 = vld [vmem:[#allocation8 + $0x90] sm:$0xff]
    %v2746 = vld [vmem:[#allocation8 + $0x98] sm:$0xff]
    %v2747 = vld [vmem:[#allocation8 + $0xa0] sm:$0xff]
    %v2748 = vld [vmem:[#allocation8 + $0xa8] sm:$0xff]
    %v2749 = vld [vmem:[#allocation8 + $0xb0] sm:$0xff]
    %v2750 = vld [vmem:[#allocation8 + $0xb8] sm:$0xff]
    %v2751 = vld [vmem:[#allocation8 + $0xc0] sm:$0xff]
    %v2752 = vld [vmem:[#allocation8 + $0xc8] sm:$0xff]
    %v2753 = vld [vmem:[#allocation8 + $0xd0] sm:$0xff]
    %v2754 = vld [vmem:[#allocation8 + $0xd8] sm:$0xff]
    %v2755 = vld [vmem:[#allocation8 + $0xe0] sm:$0xff]
    %v2756 = vld [vmem:[#allocation8 + $0xe8] sm:$0xff]
    %v2757 = vld [vmem:[#allocation8 + $0xf0] sm:$0xff]
    %v2758 = vld [vmem:[#allocation8 + $0xf8] sm:$0xff]
    %v2759 = vld [vmem:[%s4] sm:$0x3]
    %v2761 = vlaneseq
    %v2762 = vshrl.u32 %v2761, 7
    %v2763 = vsub.s32 0, %v2762
    %v2764 = vrot.slane %v2759, %v2763
    %v2765 = vlaneseq
    %v2766 = vshrl.u32 %v2765, 7
    %v2767 = vsub.s32 1, %v2766
    %v2768 = vrot.slane %v2759, %v2767
    %v2803 = vunpack.c.l.b16 %v2727
    %v2804 = vunpack.c.h.b16 %v2727
    %v2805 = vunpack.c.l.b16 %v2728
    %v2806 = vunpack.c.h.b16 %v2728
    %v2807 = vunpack.c.l.b16 %v2729
    %v2808 = vunpack.c.h.b16 %v2729
    %v2809 = vunpack.c.l.b16 %v2730
    %v2810 = vunpack.c.h.b16 %v2730
    %v2811 = vunpack.c.l.b16 %v2731
    %v2812 = vunpack.c.h.b16 %v2731
    %v2813 = vunpack.c.l.b16 %v2732
    %v2814 = vunpack.c.h.b16 %v2732
    %v2815 = vunpack.c.l.b16 %v2733
    %v2816 = vunpack.c.h.b16 %v2733
    %v2817 = vunpack.c.l.b16 %v2734
    %v2818 = vunpack.c.h.b16 %v2734
    %v2819 = vunpack.c.l.b16 %v2735
    %v2820 = vunpack.c.h.b16 %v2735
    %v2821 = vunpack.c.l.b16 %v2736
    %v2822 = vunpack.c.h.b16 %v2736
    %v2823 = vunpack.c.l.b16 %v2737
    %v2824 = vunpack.c.h.b16 %v2737
    %v2825 = vunpack.c.l.b16 %v2738
    %v2826 = vunpack.c.h.b16 %v2738
    %v2827 = vunpack.c.l.b16 %v2739
    %v2828 = vunpack.c.h.b16 %v2739
    %v2829 = vunpack.c.l.b16 %v2740
    %v2830 = vunpack.c.h.b16 %v2740
    %v2831 = vunpack.c.l.b16 %v2741
    %v2832 = vunpack.c.h.b16 %v2741
    %v2833 = vunpack.c.l.b16 %v2742
    %v2834 = vunpack.c.h.b16 %v2742
    %v2835 = vunpack.c.l.b16 %v2743
    %v2836 = vunpack.c.h.b16 %v2743
    %v2837 = vunpack.c.l.b16 %v2744
    %v2838 = vunpack.c.h.b16 %v2744
    %v2839 = vunpack.c.l.b16 %v2745
    %v2840 = vunpack.c.h.b16 %v2745
    %v2841 = vunpack.c.l.b16 %v2746
    %v2842 = vunpack.c.h.b16 %v2746
    %v2843 = vunpack.c.l.b16 %v2747
    %v2844 = vunpack.c.h.b16 %v2747
    %v2845 = vunpack.c.l.b16 %v2748
    %v2846 = vunpack.c.h.b16 %v2748
    %v2847 = vunpack.c.l.b16 %v2749
    %v2848 = vunpack.c.h.b16 %v2749
    %v2849 = vunpack.c.l.b16 %v2750
    %v2850 = vunpack.c.h.b16 %v2750
    %v2851 = vunpack.c.l.b16 %v2751
    %v2852 = vunpack.c.h.b16 %v2751
    %v2853 = vunpack.c.l.b16 %v2752
    %v2854 = vunpack.c.h.b16 %v2752
    %v2855 = vunpack.c.l.b16 %v2753
    %v2856 = vunpack.c.h.b16 %v2753
    %v2857 = vunpack.c.l.b16 %v2754
    %v2858 = vunpack.c.h.b16 %v2754
    %v2859 = vunpack.c.l.b16 %v2755
    %v2860 = vunpack.c.h.b16 %v2755
    %v2861 = vunpack.c.l.b16 %v2756
    %v2862 = vunpack.c.h.b16 %v2756
    %v2863 = vunpack.c.l.b16 %v2757
    %v2864 = vunpack.c.h.b16 %v2757
    %v2865 = vunpack.c.l.b16 %v2758
    %v2866 = vunpack.c.h.b16 %v2758
    %v2867 = vpack.c.b16 %v2805, %v2803
    %v2868 = vpack.c.b16 %v2806, %v2804
    %v2869 = vpack.c.b16 %v2809, %v2807
    %v2870 = vpack.c.b16 %v2810, %v2808
    %v2871 = vpack.c.b16 %v2813, %v2811
    %v2872 = vpack.c.b16 %v2814, %v2812
    %v2873 = vpack.c.b16 %v2817, %v2815
    %v2874 = vpack.c.b16 %v2818, %v2816
    %v2875 = vpack.c.b16 %v2821, %v2819
    %v2876 = vpack.c.b16 %v2822, %v2820
    %v2877 = vpack.c.b16 %v2825, %v2823
    %v2878 = vpack.c.b16 %v2826, %v2824
    %v2879 = vpack.c.b16 %v2829, %v2827
    %v2880 = vpack.c.b16 %v2830, %v2828
    %v2881 = vpack.c.b16 %v2833, %v2831
    %v2882 = vpack.c.b16 %v2834, %v2832
    %v2883 = vpack.c.b16 %v2837, %v2835
    %v2884 = vpack.c.b16 %v2838, %v2836
    %v2885 = vpack.c.b16 %v2841, %v2839
    %v2886 = vpack.c.b16 %v2842, %v2840
    %v2887 = vpack.c.b16 %v2845, %v2843
    %v2888 = vpack.c.b16 %v2846, %v2844
    %v2889 = vpack.c.b16 %v2849, %v2847
    %v2890 = vpack.c.b16 %v2850, %v2848
    %v2891 = vpack.c.b16 %v2853, %v2851
    %v2892 = vpack.c.b16 %v2854, %v2852
    %v2893 = vpack.c.b16 %v2857, %v2855
    %v2894 = vpack.c.b16 %v2858, %v2856
    %v2895 = vpack.c.b16 %v2861, %v2859
    %v2896 = vpack.c.b16 %v2862, %v2860
    %v2897 = vpack.c.b16 %v2865, %v2863
    %v2898 = vpack.c.b16 %v2866, %v2864
    %2931 = vmatprep.subr.bf16.mxu0 %v2882
    %2932 = vmatpush1.bf16.msra.mxu0 %v2881
    %2933 = vmatprep.subr.bf16.mxu0 %v2880
    %2934 = vmatpush1.bf16.msra.mxu0 %v2879
    %2935 = vmatprep.subr.bf16.mxu0 %v2878
    %2936 = vmatpush1.bf16.msra.mxu0 %v2877
    %2937 = vmatprep.subr.bf16.mxu0 %v2876
    %2938 = vmatpush1.bf16.msra.mxu0 %v2875
    %2939 = vmatprep.subr.bf16.mxu0 %v2874
    %2940 = vmatpush1.bf16.msra.mxu0 %v2873
    %2941 = vmatprep.subr.bf16.mxu0 %v2872
    %2942 = vmatpush1.bf16.msra.mxu0 %v2871
    %2943 = vmatprep.subr.bf16.mxu0 %v2870
    %2944 = vmatpush1.bf16.msra.mxu0 %v2869
    %2945 = vmatprep.subr.bf16.mxu0 %v2868
    %2946 = vmatpush1.bf16.msra.mxu0 %v2867
    %2947 = vmatprep.subr.bf16.mxu0 %v2898
    %2948 = vmatpush2.bf16.msra.mxu0 %v2897
    %2949 = vmatprep.subr.bf16.mxu0 %v2896
    %2950 = vmatpush2.bf16.msra.mxu0 %v2895
    %2951 = vmatprep.subr.bf16.mxu0 %v2894
    %2952 = vmatpush2.bf16.msra.mxu0 %v2893
    %2953 = vmatprep.subr.bf16.mxu0 %v2892
    %2954 = vmatpush2.bf16.msra.mxu0 %v2891
    %2955 = vmatprep.subr.bf16.mxu0 %v2890
    %2956 = vmatpush2.bf16.msra.mxu0 %v2889
    %2957 = vmatprep.subr.bf16.mxu0 %v2888
    %2958 = vmatpush2.bf16.msra.mxu0 %v2887
    %2959 = vmatprep.subr.bf16.mxu0 %v2886
    %2960 = vmatpush2.bf16.msra.mxu0 %v2885
    %2961 = vmatprep.subr.bf16.mxu0 %v2884
    %2962 = vmatpush2.bf16.msra.mxu0 %v2883
    %2963 = vmatprep.mubr.bf16.mxu0 %v2726
    %2964 = vmatmul.mubr.bf16.gmra.mxu0 %v2725
    %v2965 = vpop.f32.mrf.mxu0
    %v2966 = vadd.f32 %v2764, %v2965
    %v2967 = vpop.f32.mrf.mxu0
    %v2968 = vadd.f32 %v2768, %v2967
    %v2969 = vpop.f32.mrf.mxu0
    %v2970 = vadd.f32 %v2764, %v2969
    %v2971 = vpop.f32.mrf.mxu0
    %v2972 = vadd.f32 %v2768, %v2971
    %2973 = vdwg.mxu0
    %v2974 = vadd.f32 %v81, %v2966
    %v2975 = vadd.f32 %v82, %v2968
    %v2976 = vadd.f32 %v83, %v2970
    %v2977 = vadd.f32 %v84, %v2972
    %v2978 = vadd.f32 %v2974, %v2975
    %2979 = vadd.xlane.f32.xlu0 %v2978
    %v2980 = vpop.xlane.xlu0 %2979
    %v2981 = vadd.f32 %v2976, %v2977
    %2982 = vadd.xlane.f32.xlu0 %v2981
    %v2983 = vpop.xlane.xlu0 %2982
    %v2984 = vrcp.pop 256.0
    %v2985 = vmul.f32 %v2980, %v2984
    %v2986 = vmul.f32 %v2983, %v2984
    %v2987 = vsub.f32 %v2974, %v2985
    %v2988 = vsub.f32 %v2975, %v2985
    %v2989 = vsub.f32 %v2976, %v2986
    %v2990 = vsub.f32 %v2977, %v2986
    %v2991 = vmul.f32 %v2987, %v2987
    %v2992 = vmul.f32 %v2988, %v2988
    %v2993 = vmul.f32 %v2989, %v2989
    %v2994 = vmul.f32 %v2990, %v2990
    %v2995 = vadd.f32 %v2991, %v2992
    %2996 = vadd.xlane.f32.xlu0 %v2995
    %v2997 = vpop.xlane.xlu0 %2996
    %v2998 = vadd.f32 %v2993, %v2994
    %2999 = vadd.xlane.f32.xlu0 %v2998
    %v3000 = vpop.xlane.xlu0 %2999
    %v3001 = vmul.f32 %v2997, %v2984
    %v3002 = vmul.f32 %v3000, %v2984
    %v3003 = vadd.f32 %v3001, 1e-05
    %v3004 = vadd.f32 %v3002, 1e-05
    %v3005 = vrsqrt.pop %v3003
    %v3006 = vrsqrt.pop %v3004
    %v3007 = vmul.f32 %v2987, %v3005
    %v3008 = vmul.f32 %v2988, %v3005
    %v3009 = vmul.f32 %v2989, %v3006
    %v3010 = vmul.f32 %v2990, %v3006
    %v3011 = vld [vmem:[%s5] sm:$0x3]
    %v3013 = vlaneseq
    %v3014 = vshrl.u32 %v3013, 7
    %v3015 = vsub.s32 0, %v3014
    %v3016 = vrot.slane %v3011, %v3015
    %v3017 = vlaneseq
    %v3018 = vshrl.u32 %v3017, 7
    %v3019 = vsub.s32 1, %v3018
    %v3020 = vrot.slane %v3011, %v3019
    %v3023 = vmul.f32 %v3007, %v3016
    %v3024 = vmul.f32 %v3008, %v3020
    %v3025 = vmul.f32 %v3009, %v3016
    %v3026 = vmul.f32 %v3010, %v3020
    %v3027 = vld [vmem:[%s6] sm:$0x3]
    %v3029 = vlaneseq
    %v3030 = vshrl.u32 %v3029, 7
    %v3031 = vsub.s32 0, %v3030
    %v3032 = vrot.slane %v3027, %v3031
    %v3033 = vlaneseq
    %v3034 = vshrl.u32 %v3033, 7
    %v3035 = vsub.s32 1, %v3034
    %v3036 = vrot.slane %v3027, %v3035
    %v3039 = vadd.f32 %v3023, %v3032
    %v3040 = vadd.f32 %v3024, %v3036
    %v3041 = vadd.f32 %v3025, %v3032
    %v3042 = vadd.f32 %v3026, %v3036
    %3043 = vst [vmem:[#allocation10] sm:$0xff] %v3039
    %3044 = vst [vmem:[#allocation10 + $0x8] sm:$0xff] %v3040
    %3045 = vst [vmem:[#allocation10 + $0x10] sm:$0xff] %v3041
    %3046 = vst [vmem:[#allocation10 + $0x18] sm:$0xff] %v3042
    // Predicated region
    $region46: #{tpu_custom_call.1} parent=1 // pred_check
      _
    $region47: #{tpu_custom_call.1} parent=1 // pred_check_branch
      %3048 = sbr.rel (0) target = $region49
    $region48: #{tpu_custom_call.1} parent=1 // pred_region
      %s3050 = ssub.s32 512, 512
      %3051 = vsyncadd [#allocation4], %s3050
      %s3052 = sshll.u32 [#allocation10], 4
      %s3053 = int_to_ptr.vmem [resolvable:$true] %s3052
      %3058 = dma.vmem_to_hbm [thread:$0]  %s3053, 512, %s7, [#allocation4], 256, 256, 16
    $region49: #{tpu_custom_call.1} parent=1 // pred_fallthru
      _
    // Predicated region
    $region50: #{tpu_custom_call.1} parent=1 // pred_check
      _
    $region51: #{tpu_custom_call.1} parent=1 // pred_check_branch
      %3060 = sbr.rel (0) target = $region53
    $region52: #{tpu_custom_call.1} parent=1 // pred_region
      %3061 = dma.done [#allocation4], 512
    $region53: #{tpu_custom_call.1} parent=1 // pred_fallthru
      _
    %3062 = vsyncpa [#allocation3], 1
    %3063 = vsyncpa [#allocation6], 1
    %3064 = vsyncpa [#allocation9], 1
    %3065 = vsyncpa [#allocation4], 1

</llo_original>
